<compile_context>
chip_gen: v5e
topology: v5e:2x2
jax: 0.10.0
libtpu: 0.0.40
codegen_flags: <defaults>
</compile_context>

<pallas_src>
import functools

import jax
import jax.numpy as jnp
from jax.experimental import pallas as pl
from jax.experimental.pallas import tpu as pltpu

# ---------------------------------------------------------------------------
# Model dimensions (from FastNet.__init__)
# ---------------------------------------------------------------------------
IN_DIM = 3 * 784                      # 2352
H1_DIM = int(10 * 4.3 * 4.3)          # 184
H2_DIM = int(10 * 4.3)                # 43
CATEGORIES = 10                       # example value for the constructor arg


def _round_up(x, m):
    return (x + m - 1) // m * m


H1_P = _round_up(H1_DIM, 128)         # 256
H2_P = _round_up(H2_DIM, 128)         # 128


# ---------------------------------------------------------------------------
# Device-dependent tiling knobs
# ---------------------------------------------------------------------------
@functools.lru_cache(maxsize=None)
def _device_kind():
    try:
        return jax.devices()[0].device_kind.lower()
    except Exception:
        return ""


def _is_v7(kind):
    return ("v7" in kind) or ("7x" in kind)


def _tile_b_max():
    kind = _device_kind()
    if ("v6" in kind) or _is_v7(kind):
        return 1024        # ~30 MB worst case incl. temporaries; fits raised limit
    return 512             # v5e 16 MiB scoped default / unknown chips: stay safe


def _vmem_limit_bytes():
    kind = _device_kind()
    if _is_v7(kind):
        return 48 << 20    # v7x: 64 MiB physical VMEM -> leave headroom
    return 64 << 20        # v5e / v6e: 128 MiB physical VMEM


def _pick_tile_b(batch):
    tile_b = min(_tile_b_max(), _round_up(batch, 8))
    # v7x has 2 TensorCores: make sure the (parallel) batch grid has >= 2 steps
    # so both cores get work instead of one sitting idle.
    if _is_v7(_device_kind()) and batch > 8:
        tile_b = min(tile_b, _round_up(-(-batch // 2), 8))
    return max(int(tile_b), 8)


@functools.lru_cache(maxsize=None)
def _single_buffer_ok():
    """Probe once whether BlockSpec(pipeline_mode=pl.Buffered(1)) lowers on this
    jax/libtpu combination.  Falls back to default double buffering if not."""
    try:
        def _probe_kernel(a_ref, o_ref):
            o_ref[...] = a_ref[...] + 1.0

        f = pl.pallas_call(
            _probe_kernel,
            out_shape=jax.ShapeDtypeStruct((8, 128), jnp.float32),
            grid=(1,),
            in_specs=[pl.BlockSpec((8, 128), lambda i: (0, 0),
                                   pipeline_mode=pl.Buffered(1))],
            out_specs=pl.BlockSpec((8, 128), lambda i: (0, 0)),
        )
        jax.block_until_ready(f(jnp.zeros((8, 128), jnp.float32)))
        return True
    except Exception:
        return False


def _resident_spec(shape, single_buffer):
    """Weights/biases: constant index_map -> VMEM-resident across grid steps."""
    index_map = lambda i: (0,) * len(shape)
    if single_buffer:
        # Constant block index -> no per-step re-DMA, so one buffer suffices;
        # frees ~1.3 MB of VMEM for the batch tile.
        return pl.BlockSpec(shape, index_map, pipeline_mode=pl.Buffered(1))
    return pl.BlockSpec(shape, index_map)


# ---------------------------------------------------------------------------
# Pallas kernel: fused fc1 -> relu -> fc2 -> relu -> fc3 -> relu
# (one batch tile per grid step; weights stay resident in VMEM)
# ---------------------------------------------------------------------------
def fastnet_kernel(x_ref, w1_ref, b1_ref, w2_ref, b2_ref, w3_ref, b3_ref,
                   o_ref):
    # LOAD-BEARING INVARIANTS -- read before editing:
    #  * Partial last batch tile: rows of x_ref past `batch` hold garbage data,
    #    but every row of every matmul/ReLU below is independent and those rows
    #    map only to output rows Pallas never writes back.  Do NOT add any
    #    cross-row reduction, stats write, or NaN check over the whole tile
    #    without masking the tail rows first.
    #  * Padded weight rows/cols and padded bias entries are exactly 0, and
    #    ReLU(0) == 0, so padded feature columns contribute nothing downstream.
    x = x_ref[...].astype(jnp.bfloat16)                     # no-op if x is bf16

    h1 = jnp.dot(x, w1_ref[...], preferred_element_type=jnp.float32)
    h1 = jnp.maximum(h1 + b1_ref[...], 0.0)                 # (TB, H1_P) f32

    h2 = jnp.dot(h1.astype(jnp.bfloat16), w2_ref[...],
                 preferred_element_type=jnp.float32)
    h2 = jnp.maximum(h2 + b2_ref[...], 0.0)                 # (TB, H2_P) f32

    h3 = jnp.dot(h2.astype(jnp.bfloat16), w3_ref[...],
                 preferred_element_type=jnp.float32)
    o_ref[...] = jnp.maximum(h3 + b3_ref[...], 0.0)         # (TB, categories) f32


# ---------------------------------------------------------------------------
# Parameter preparation (one-time, outside the per-call hot path)
# ---------------------------------------------------------------------------
def _pad2d(a, rows, cols):
    return jnp.pad(a, ((0, rows - a.shape[0]), (0, cols - a.shape[1])))


def prepare_params(params, categories=CATEGORIES):
    """Pad + cast the weights ONCE.

    Weights -> bf16 (halves resident bytes, native MXU input); biases -> f32
    rows (1, N).  Padding values are exactly 0 (ReLU(0) == 0), which keeps the
    padded feature columns inert -- do not change this.  The last layer is NOT
    padded on its output dim: the kernel writes (batch, categories) directly,
    so no post-kernel slice is needed.
    """
    w1, b1, w2, b2, w3, b3 = params
    ncat = int(categories)

    w1p = _pad2d(jnp.asarray(w1, jnp.float32), IN_DIM, H1_P).astype(jnp.bfloat16)
    w2p = _pad2d(jnp.asarray(w2, jnp.float32), H1_P, H2_P).astype(jnp.bfloat16)
    w3p = _pad2d(jnp.asarray(w3, jnp.float32), H2_P, ncat).astype(jnp.bfloat16)

    b1p = jnp.pad(jnp.asarray(b1, jnp.float32), (0, H1_P - H1_DIM)).reshape(1, H1_P)
    b2p = jnp.pad(jnp.asarray(b2, jnp.float32), (0, H2_P - H2_DIM)).reshape(1, H2_P)
    b3p = jnp.asarray(b3, jnp.float32).reshape(1, ncat)
    return (w1p, b1p, w2p, b2p, w3p, b3p)


# ---------------------------------------------------------------------------
# Forward pass
# ---------------------------------------------------------------------------
@functools.partial(jax.jit, static_argnames=("tile_b", "single_buffer_weights",
                                             "vmem_limit_bytes"))
def _fastnet_pallas(x2d, w1p, b1p, w2p, b2p, w3p, b3p, *, tile_b,
                    single_buffer_weights, vmem_limit_bytes):
    batch = x2d.shape[0]
    ncat = w3p.shape[1]
    num_tiles = pl.cdiv(batch, tile_b)
    sb = single_buffer_weights

    return pl.pallas_call(
        fastnet_kernel,
        out_shape=jax.ShapeDtypeStruct((batch, ncat), jnp.float32),
        grid=(num_tiles,),
        in_specs=[
            # x: tiled over batch.  The K dim equals the full array dim (2352),
            # which waives 128-divisibility, so x is never padded/copied.
            pl.BlockSpec((tile_b, IN_DIM), lambda i: (i, 0)),
            # weights / biases: VMEM-resident, single-buffered when supported.
            _resident_spec((IN_DIM, H1_P), sb),
            _resident_spec((1, H1_P), sb),
            _resident_spec((H1_P, H2_P), sb),
            _resident_spec((1, H2_P), sb),
            _resident_spec((H2_P, ncat), sb),
            _resident_spec((1, ncat), sb),
        ],
        # Output last dim == full array dim (categories): no padding and no
        # post-kernel slice; output traffic is negligible next to the x stream.
        out_specs=pl.BlockSpec((tile_b, ncat), lambda i: (i, 0)),
        compiler_params=pltpu.CompilerParams(
            dimension_semantics=("parallel",),   # batch axis: core-shardable
            vmem_limit_bytes=vmem_limit_bytes),
    )(x2d, w1p, b1p, w2p, b2p, w3p, b3p)


def fastnet_forward(x, prepared_params, tile_b=None):
    """x: anything flattening to (B, 3*784).  Returns (B, categories) f32.

    Feed x as bf16 straight from its producer when possible: x is the dominant
    HBM traffic and bf16 halves it.  f32 (the PyTorch `.float()` semantics)
    also works; other dtypes are cast to f32 here.
    """
    x2d = jnp.asarray(x).reshape(-1, IN_DIM)
    if x2d.dtype not in (jnp.bfloat16, jnp.float32):
        x2d = x2d.astype(jnp.float32)
    batch = x2d.shape[0]
    if tile_b is None:
        tile_b = _pick_tile_b(batch)
    return _fastnet_pallas(
        x2d, *prepared_params,
        tile_b=int(tile_b),
        single_buffer_weights=_single_buffer_ok(),
        vmem_limit_bytes=_vmem_limit_bytes())


# ---------------------------------------------------------------------------
# Deterministic parameter init (mimics nn.Linear default U(-1/sqrt(fan_in), .))
# ---------------------------------------------------------------------------
def init_params(key, categories=CATEGORIES):
    ks = jax.random.split(key, 6)

    def linear(kw, kb, fan_in, fan_out):
        bound = 1.0 / jnp.sqrt(fan_in)
        w = jax.random.uniform(kw, (fan_in, fan_out), jnp.float32,
                               minval=-bound, maxval=bound)
        b = jax.random.uniform(kb, (fan_out,), jnp.float32,
                               minval=-bound, maxval=bound)
        return w, b

    w1, b1 = linear(ks[0], ks[1], IN_DIM, H1_DIM)
    w2, b2 = linear(ks[2], ks[3], H1_DIM, H2_DIM)
    w3, b3 = linear(ks[4], ks[5], H2_DIM, categories)
    return (w1, b1, w2, b2, w3, b3)


# ---------------------------------------------------------------------------
# References
# ---------------------------------------------------------------------------
def reference_forward_f32(x, params):
    """Exact f32 semantics of the PyTorch module."""
    w1, b1, w2, b2, w3, b3 = params
    h = jnp.asarray(x).reshape(-1, IN_DIM).astype(jnp.float32)
    h = jnp.maximum(h @ w1 + b1, 0.0)
    h = jnp.maximum(h @ w2 + b2, 0.0)
    h = jnp.maximum(h @ w3 + b3, 0.0)
    return h


def reference_forward_bf16(x, prepared):
    """Emulates the kernel's bf16-input / f32-accumulate math exactly."""
    w1p, b1p, w2p, b2p, w3p, b3p = prepared
    h = jnp.asarray(x).reshape(-1, IN_DIM).astype(jnp.bfloat16)
    h = jnp.maximum(jnp.dot(h, w1p, preferred_element_type=jnp.float32) + b1p, 0.0)
    h = jnp.maximum(jnp.dot(h.astype(jnp.bfloat16), w2p,
                            preferred_element_type=jnp.float32) + b2p, 0.0)
    h = jnp.maximum(jnp.dot(h.astype(jnp.bfloat16), w3p,
                            preferred_element_type=jnp.float32) + b3p, 0.0)
    return h


if __name__ == "__main__":
    key = jax.random.PRNGKey(0)
    k_params, k_x1, k_x2 = jax.random.split(key, 3)

    params = init_params(k_params, CATEGORIES)
    prepared = prepare_params(params, CATEGORIES)   # one-time pad + bf16 cast

    # Small example consistent with view(-1, 3*784): batch=2, NCHW (3,28,28), f32.
    x = jax.random.normal(k_x1, (2, 3, 28, 28), dtype=jnp.float32)
    out = jax.block_until_ready(fastnet_forward(x, prepared))
    assert out.shape == (2, CATEGORIES), out.shape
    assert bool(jnp.all(jnp.isfinite(out)))
    # Tight check vs an exact emulation of the kernel's bf16/f32 math.
    ref_bf16 = reference_forward_bf16(x, prepared)
    assert jnp.allclose(out, ref_bf16, atol=2e-3, rtol=2e-3), (
        float(jnp.max(jnp.abs(out - ref_bf16))))
    # Looser check vs the original f32 module semantics (bf16 MXU inputs).
    ref_f32 = reference_forward_f32(x, params)
    assert jnp.allclose(out, ref_f32, atol=5e-2, rtol=5e-2), (
        float(jnp.max(jnp.abs(out - ref_f32))))

    # Larger batch fed in bf16 (the recommended producer dtype), with a small
    # forced tile so multiple pipelined grid steps and a partial last tile are
    # exercised (300 = 2*128 + 44).
    x_big = jax.random.normal(k_x2, (300, 3, 28, 28),
                              dtype=jnp.float32).astype(jnp.bfloat16)
    out_big = jax.block_until_ready(fastnet_forward(x_big, prepared, tile_b=128))
    assert out_big.shape == (300, CATEGORIES), out_big.shape
    ref_big = reference_forward_bf16(x_big, prepared)
    assert jnp.allclose(out_big, ref_big, atol=2e-3, rtol=2e-3), (
        float(jnp.max(jnp.abs(out_big - ref_big))))

    # And with the auto-picked (per-generation) tile size.
    out_auto = jax.block_until_ready(fastnet_forward(x_big, prepared))
    assert out_auto.shape == (300, CATEGORIES), out_auto.shape
    assert jnp.allclose(out_auto, ref_big, atol=2e-3, rtol=2e-3), (
        float(jnp.max(jnp.abs(out_auto - ref_big))))

    # TODO(synk): FastNet.unfreeze() is a training-time utility (requires_grad)
    # with no forward-pass / Pallas equivalent.
    print("KERNEL_OK")
</pallas_src>

<mosaic_0001>
module attributes {stable_mosaic.version = 11 : i64} {
  func.func @_probe_kernel(%arg0: i32, %arg1: memref<8x128xf32, #tpu.memory_space<vmem>>, %arg2: memref<8x128xf32, #tpu.memory_space<vmem>>) attributes {dimension_semantics = [#tpu.dimension_semantics<arbitrary>], iteration_bounds = array<i64: 1>, scalar_prefetch = 0 : i64, scratch_operands = 0 : i64, tpu.core_type = #tpu.core_type<tc>, window_params = [{pipeline_mode = #tpu.pipeline_mode<synchronous>, transform_indices = @transform_0, window_bounds = array<i64: 8, 128>}, {pipeline_mode = #tpu.pipeline_mode<synchronous>, transform_indices = @transform_1, window_bounds = array<i64: 8, 128>}]} {
    %c0 = arith.constant 0 : index
    %c0_0 = arith.constant 0 : index
    %0 = vector.load %arg1[%c0, %c0_0] : memref<8x128xf32, #tpu.memory_space<vmem>>, vector<8x128xf32>
    %cst = arith.constant 1.000000e+00 : f32
    %1 = vector.broadcast %cst : f32 to vector<8x128xf32>
    %2 = arith.addf %0, %1 : vector<8x128xf32>
    %c0_1 = arith.constant 0 : index
    %c0_2 = arith.constant 0 : index
    %3 = vector.load %arg2[%c0_1, %c0_2] : memref<8x128xf32, #tpu.memory_space<vmem>>, vector<8x128xf32>
    tpu.vector_store %arg2[%c0_1, %c0_2], %2 {strides = array<i32>} : memref<8x128xf32, #tpu.memory_space<vmem>>, vector<8x128xf32>,
    return
  }
  func.func @transform_0(%arg0: i32) -> (i32, i32) {
    %c0_i32 = arith.constant 0 : i32
    %c0_i32_0 = arith.constant 0 : i32
    %c0_i32_1 = arith.constant 0 : i32
    return %c0_i32, %c0_i32_0 : i32, i32
  }
  func.func @transform_1(%arg0: i32) -> (i32, i32) {
    %c0_i32 = arith.constant 0 : i32
    %c0_i32_0 = arith.constant 0 : i32
    %c0_i32_1 = arith.constant 0 : i32
    return %c0_i32, %c0_i32_0 : i32, i32
  }
}

module attributes {stable_mosaic.version = 11 : i64} {
  func.func @fastnet_kernel(%arg0: i32, %arg1: memref<8x2352xf32, #tpu.memory_space<vmem>>, %arg2: memref<2352x256xbf16, #tpu.memory_space<vmem>>, %arg3: memref<1x256xf32, #tpu.memory_space<vmem>>, %arg4: memref<256x128xbf16, #tpu.memory_space<vmem>>, %arg5: memref<1x128xf32, #tpu.memory_space<vmem>>, %arg6: memref<128x10xbf16, #tpu.memory_space<vmem>>, %arg7: memref<1x10xf32, #tpu.memory_space<vmem>>, %arg8: memref<8x10xf32, #tpu.memory_space<vmem>>) attributes {dimension_semantics = [#tpu.dimension_semantics<parallel>], iteration_bounds = array<i64: 1>, scalar_prefetch = 0 : i64, scratch_operands = 0 : i64, tpu.core_type = #tpu.core_type<tc>, window_params = [{transform_indices = @transform_0, window_bounds = array<i64: 8, 2352>}, {pipeline_mode = #tpu.pipeline_mode<synchronous>, transform_indices = @transform_1, window_bounds = array<i64: 2352, 256>}, {pipeline_mode = #tpu.pipeline_mode<synchronous>, transform_indices = @transform_2, window_bounds = array<i64: 1, 256>}, {pipeline_mode = #tpu.pipeline_mode<synchronous>, transform_indices = @transform_3, window_bounds = array<i64: 256, 128>}, {pipeline_mode = #tpu.pipeline_mode<synchronous>, transform_indices = @transform_4, window_bounds = array<i64: 1, 128>}, {pipeline_mode = #tpu.pipeline_mode<synchronous>, transform_indices = @transform_5, window_bounds = array<i64: 128, 10>}, {pipeline_mode = #tpu.pipeline_mode<synchronous>, transform_indices = @transform_6, window_bounds = array<i64: 1, 10>}, {transform_indices = @transform_7, window_bounds = array<i64: 8, 10>}]} {
    %c0 = arith.constant 0 : index
    %c0_0 = arith.constant 0 : index
    %0 = vector.load %arg1[%c0, %c0_0] : memref<8x2352xf32, #tpu.memory_space<vmem>>, vector<8x2352xf32>
    %1 = arith.truncf %0 : vector<8x2352xf32> to vector<8x2352xbf16>
    %c0_1 = arith.constant 0 : index
    %c0_2 = arith.constant 0 : index
    %2 = vector.load %arg2[%c0_1, %c0_2] : memref<2352x256xbf16, #tpu.memory_space<vmem>>, vector<2352x256xbf16>
    %cst = arith.constant dense<0.000000e+00> : vector<8x256xf32>
    %3 = tpu.matmul %1, %2, %cst {dimension_numbers = #tpu.dot_dimension_numbers<[1], [0], [0], [1], [0, 0, 1, 1], [], []>} : vector<8x2352xbf16>, vector<2352x256xbf16>, vector<8x256xf32> -> vector<8x256xf32>
    %c0_3 = arith.constant 0 : index
    %c0_4 = arith.constant 0 : index
    %4 = vector.load %arg3[%c0_3, %c0_4] : memref<1x256xf32, #tpu.memory_space<vmem>>, vector<1x256xf32>
    %5 = vector.broadcast %4 : vector<1x256xf32> to vector<8x256xf32>
    %6 = arith.addf %3, %5 : vector<8x256xf32>
    %cst_5 = arith.constant 0.000000e+00 : f32
    %7 = vector.broadcast %cst_5 : f32 to vector<8x256xf32>
    %8 = arith.maximumf %6, %7 : vector<8x256xf32>
    %9 = arith.truncf %8 : vector<8x256xf32> to vector<8x256xbf16>
    %c0_6 = arith.constant 0 : index
    %c0_7 = arith.constant 0 : index
    %10 = vector.load %arg4[%c0_6, %c0_7] : memref<256x128xbf16, #tpu.memory_space<vmem>>, vector<256x128xbf16>
    %cst_8 = arith.constant dense<0.000000e+00> : vector<8x128xf32>
    %11 = tpu.matmul %9, %10, %cst_8 {dimension_numbers = #tpu.dot_dimension_numbers<[1], [0], [0], [1], [0, 0, 1, 1], [], []>} : vector<8x256xbf16>, vector<256x128xbf16>, vector<8x128xf32> -> vector<8x128xf32>
    %c0_9 = arith.constant 0 : index
    %c0_10 = arith.constant 0 : index
    %12 = vector.load %arg5[%c0_9, %c0_10] : memref<1x128xf32, #tpu.memory_space<vmem>>, vector<1x128xf32>
    %13 = vector.broadcast %12 : vector<1x128xf32> to vector<8x128xf32>
    %14 = arith.addf %11, %13 : vector<8x128xf32>
    %cst_11 = arith.constant 0.000000e+00 : f32
    %15 = vector.broadcast %cst_11 : f32 to vector<8x128xf32>
    %16 = arith.maximumf %14, %15 : vector<8x128xf32>
    %17 = arith.truncf %16 : vector<8x128xf32> to vector<8x128xbf16>
    %c0_12 = arith.constant 0 : index
    %c0_13 = arith.constant 0 : index
    %18 = vector.load %arg6[%c0_12, %c0_13] : memref<128x10xbf16, #tpu.memory_space<vmem>>, vector<128x10xbf16>
    %cst_14 = arith.constant dense<0.000000e+00> : vector<8x10xf32>
    %19 = tpu.matmul %17, %18, %cst_14 {dimension_numbers = #tpu.dot_dimension_numbers<[1], [0], [0], [1], [0, 0, 1, 1], [], []>} : vector<8x128xbf16>, vector<128x10xbf16>, vector<8x10xf32> -> vector<8x10xf32>
    %c0_15 = arith.constant 0 : index
    %c0_16 = arith.constant 0 : index
    %20 = vector.load %arg7[%c0_15, %c0_16] : memref<1x10xf32, #tpu.memory_space<vmem>>, vector<1x10xf32>
    %21 = vector.broadcast %20 : vector<1x10xf32> to vector<8x10xf32>
    %22 = arith.addf %19, %21 : vector<8x10xf32>
    %cst_17 = arith.constant 0.000000e+00 : f32
    %23 = vector.broadcast %cst_17 : f32 to vector<8x10xf32>
    %24 = arith.maximumf %22, %23 : vector<8x10xf32>
    %c0_18 = arith.constant 0 : index
    %c0_19 = arith.constant 0 : index
    %25 = vector.load %arg8[%c0_18, %c0_19] : memref<8x10xf32, #tpu.memory_space<vmem>>, vector<8x10xf32>
    tpu.vector_store %arg8[%c0_18, %c0_19], %24 {strides = array<i32>} : memref<8x10xf32, #tpu.memory_space<vmem>>, vector<8x10xf32>,
    return
  }
  func.func @transform_0(%arg0: i32) -> (i32, i32) {
    %c0_i32 = arith.constant 0 : i32
    %c0_i32_0 = arith.constant 0 : i32
    return %arg0, %c0_i32 : i32, i32
  }
  func.func @transform_1(%arg0: i32) -> (i32, i32) {
    %c0_i32 = arith.constant 0 : i32
    %c0_i32_0 = arith.constant 0 : i32
    %c0_i32_1 = arith.constant 0 : i32
    return %c0_i32, %c0_i32_0 : i32, i32
  }
  func.func @transform_2(%arg0: i32) -> (i32, i32) {
    %c0_i32 = arith.constant 0 : i32
    %c0_i32_0 = arith.constant 0 : i32
    %c0_i32_1 = arith.constant 0 : i32
    return %c0_i32, %c0_i32_0 : i32, i32
  }
  func.func @transform_3(%arg0: i32) -> (i32, i32) {
    %c0_i32 = arith.constant 0 : i32
    %c0_i32_0 = arith.constant 0 : i32
    %c0_i32_1 = arith.constant 0 : i32
    return %c0_i32, %c0_i32_0 : i32, i32
  }
  func.func @transform_4(%arg0: i32) -> (i32, i32) {
    %c0_i32 = arith.constant 0 : i32
    %c0_i32_0 = arith.constant 0 : i32
    %c0_i32_1 = arith.constant 0 : i32
    return %c0_i32, %c0_i32_0 : i32, i32
  }
  func.func @transform_5(%arg0: i32) -> (i32, i32) {
    %c0_i32 = arith.constant 0 : i32
    %c0_i32_0 = arith.constant 0 : i32
    %c0_i32_1 = arith.constant 0 : i32
    return %c0_i32, %c0_i32_0 : i32, i32
  }
  func.func @transform_6(%arg0: i32) -> (i32, i32) {
    %c0_i32 = arith.constant 0 : i32
    %c0_i32_0 = arith.constant 0 : i32
    %c0_i32_1 = arith.constant 0 : i32
    return %c0_i32, %c0_i32_0 : i32, i32
  }
  func.func @transform_7(%arg0: i32) -> (i32, i32) {
    %c0_i32 = arith.constant 0 : i32
    %c0_i32_0 = arith.constant 0 : i32
    return %arg0, %c0_i32 : i32, i32
  }
}

</mosaic_0001>

<llo_original>
// kernel: tpu_custom_call.1
$region0: #{tpu_custom_call.1}
  #allocation0 [shape = 'u32[]', space=smem, size = 0x4, offset = 0x4, fixed_abs, tag = 'smem constant byte address 0x4 - core index']
  #allocation1 [shape = 'u32[72,128]{1,0:T(1,128)}', space=vmem, size = 0x9000, scoped, tag = 'internal scratch']
  %s0 = inlined_call_operand.hbm [shape: f32[8,128], index: 0, kind: input, shape index: {}]
  %s1 = inlined_call_operand.hbm [shape: f32[8,128], index: 1, kind: output, shape index: {}]
  %s2 = sld [smem:[#allocation0]]
  $region18: #{tpu_custom_call.1} parent=0
    _
  %s4 = ssub.s32 1, %s2
  %s5 = scalar_select 0, %s4, %s2
  $region1: #{tpu_custom_call.1} parent=0
    #allocation2 [shape = 'u8[4096]{0}', space=vmem, size = 0x1000, scoped, tag = 'input window, operand 0, single buffered']
    #allocation3 [shape = 's32[1]{0}', space=sflag, size = 0x4, scoped, tag = 'scoped memory for tpu_custom_call.1']
    #allocation4 [shape = 's32[1]{0}', space=sflag, size = 0x4, scoped, tag = 'scoped memory for tpu_custom_call.1']
    #allocation5 [shape = 'u8[4096]{0}', space=vmem, size = 0x1000, scoped, tag = 'output window, operand 0, single buffered']
    %6 = vsyncpa [#allocation3], 0
    %7 = vsyncpa [#allocation4], 0
    // Predicated region
    $region2: #{tpu_custom_call.1} parent=1 // pred_check
      _
    $region3: #{tpu_custom_call.1} parent=1 // pred_check_branch
      %9 = sbr.rel (0) target = $region5
    $region4: #{tpu_custom_call.1} parent=1 // pred_region
      %11 = vsyncadd [#allocation3], 0
      %s13 = sshll.u32 %s0, 4
      %s14 = int_to_ptr.hbm [resolvable:$true] %s13
      %s15 = sshll.u32 [#allocation2], 4
      %s16 = int_to_ptr.vmem [resolvable:$true] %s15
      %18 = dma.hbm_to_vmem [thread:$0]  %s14, 128, %s16, [#allocation3]
    $region5: #{tpu_custom_call.1} parent=1 // pred_fallthru
      _
    // Predicated region
    $region6: #{tpu_custom_call.1} parent=1 // pred_check
      _
    $region7: #{tpu_custom_call.1} parent=1 // pred_check_branch
      %20 = sbr.rel (0) target = $region9
    $region8: #{tpu_custom_call.1} parent=1 // pred_region
      %22 = dma.done [#allocation3], 128
    $region9: #{tpu_custom_call.1} parent=1 // pred_fallthru
      _
    %v23 = vld [vmem:[#allocation2] sm:$0xff]
    %v24 = vadd.f32 %v23, 1.0
    %25 = vst [vmem:[#allocation5] sm:$0xff] %v24
    // Predicated region
    $region10: #{tpu_custom_call.1} parent=1 // pred_check
      _
    $region11: #{tpu_custom_call.1} parent=1 // pred_check_branch
      %27 = sbr.rel (0) target = $region13
    $region12: #{tpu_custom_call.1} parent=1 // pred_region
      %29 = vsyncadd [#allocation4], 0
      %s31 = sshll.u32 [#allocation5], 4
      %s32 = int_to_ptr.vmem [resolvable:$true] %s31
      %s33 = sshll.u32 %s1, 4
      %s34 = int_to_ptr.hbm [resolvable:$true] %s33
      %36 = dma.vmem_to_hbm [thread:$0]  %s32, 128, %s34, [#allocation4]
    $region13: #{tpu_custom_call.1} parent=1 // pred_fallthru
      _
    // Predicated region
    $region14: #{tpu_custom_call.1} parent=1 // pred_check
      _
    $region15: #{tpu_custom_call.1} parent=1 // pred_check_branch
      %38 = sbr.rel (0) target = $region17
    $region16: #{tpu_custom_call.1} parent=1 // pred_region
      %40 = dma.done [#allocation4], 128
    $region17: #{tpu_custom_call.1} parent=1 // pred_fallthru
      _
    %41 = vsyncpa [#allocation3], 1
    %42 = vsyncpa [#allocation4], 1

// kernel: _fastnet_pallas.1
$region0: #{_fastnet_pallas.1}
  #allocation0 [shape = 'u32[]', space=smem, size = 0x4, offset = 0x4, fixed_abs, tag = 'smem constant byte address 0x4 - core index']
  #allocation1 [shape = 'u32[72,128]{1,0:T(1,128)}', space=vmem, size = 0x9000, scoped, tag = 'internal scratch']
  %s0 = inlined_call_operand.hbm [shape: f32[2,2352], index: 0, kind: input, shape index: {}]
  %s1 = inlined_call_operand.hbm [shape: bf16[2352,256], index: 1, kind: input, shape index: {}]
  %s2 = inlined_call_operand.hbm [shape: f32[1,256], index: 2, kind: input, shape index: {}]
  %s3 = inlined_call_operand.hbm [shape: bf16[256,128], index: 3, kind: input, shape index: {}]
  %s4 = inlined_call_operand.hbm [shape: f32[1,128], index: 4, kind: input, shape index: {}]
  %s5 = inlined_call_operand.vmem [shape: bf16[128,10], index: 5, kind: input, shape index: {}]
  %s6 = inlined_call_operand.hbm [shape: f32[1,10], index: 6, kind: input, shape index: {}]
  %s7 = inlined_call_operand.hbm [shape: f32[2,10], index: 7, kind: output, shape index: {}]
  %s8 = sld [smem:[#allocation0]]
  $region62: #{_fastnet_pallas.1} parent=0
    _
  %s10 = ssub.s32 1, %s8
  %s11 = scalar_select 0, %s10, %s8
  $region1: #{_fastnet_pallas.1} parent=0
    #allocation2 [shape = 'u8[77824]{0}', space=vmem, size = 0x13000, scoped, tag = 'input window, operand 0, single buffered']
    #allocation3 [shape = 's32[1]{0}', space=sflag, size = 0x4, scoped, tag = 'scoped memory for _fastnet_pallas.1']
    #allocation4 [shape = 's32[1]{0}', space=sflag, size = 0x4, scoped, tag = 'scoped memory for _fastnet_pallas.1']
    #allocation5 [shape = 'u8[1204224]{0}', space=vmem, size = 0x126000, scoped, tag = 'input window, operand 1, single buffered']
    #allocation6 [shape = 's32[1]{0}', space=sflag, size = 0x4, scoped, tag = 'scoped memory for _fastnet_pallas.1']
    #allocation7 [shape = 'u8[1024]{0}', space=vmem, size = 0x400, scoped, tag = 'input window, operand 2, single buffered']
    #allocation8 [shape = 'u8[65536]{0}', space=vmem, size = 0x10000, scoped, tag = 'input window, operand 3, single buffered']
    #allocation9 [shape = 's32[1]{0}', space=sflag, size = 0x4, scoped, tag = 'scoped memory for _fastnet_pallas.1']
    #allocation10 [shape = 'u8[512]{0}', space=vmem, size = 0x400, scoped, tag = 'input window, operand 4, single buffered']
    #allocation11 [shape = 'u8[512]{0}', space=vmem, size = 0x400, scoped, tag = 'input window, operand 6, single buffered']
    #allocation12 [shape = 's32[1]{0}', space=sflag, size = 0x4, scoped, tag = 'scoped memory for _fastnet_pallas.1']
    #allocation13 [shape = 'u8[4096]{0}', space=vmem, size = 0x1000, scoped, tag = 'output window, operand 0, single buffered']
    %12 = vsyncpa [#allocation3], 0
    %13 = vsyncpa [#allocation6], 0
    %14 = vsyncpa [#allocation9], 0
    %15 = vsyncpa [#allocation12], 0
    %16 = vsyncpa [#allocation4], 0
    // Predicated region
    $region2: #{_fastnet_pallas.1} parent=1 // pred_check
      _
    $region3: #{_fastnet_pallas.1} parent=1 // pred_check_branch
      %18 = sbr.rel (0) target = $region5
    $region4: #{_fastnet_pallas.1} parent=1 // pred_region
      %20 = vsyncadd [#allocation3], 1824
      %s21 = sshll.u32 %s0, 4
      %s22 = int_to_ptr.hbm [resolvable:$true] %s21
      %s23 = sshll.u32 [#allocation2], 4
      %s24 = int_to_ptr.vmem [resolvable:$true] %s23
      %29 = dma.hbm_to_vmem [thread:$0]  %s22, 608, %s24, [#allocation3], 608, 608, 38
    $region5: #{_fastnet_pallas.1} parent=1 // pred_fallthru
      _
    // Predicated region
    $region6: #{_fastnet_pallas.1} parent=1 // pred_check
      _
    $region7: #{_fastnet_pallas.1} parent=1 // pred_check_branch
      %31 = sbr.rel (0) target = $region9
    $region8: #{_fastnet_pallas.1} parent=1 // pred_region
      %33 = vsyncadd [#allocation6], 0
      %s34 = sshll.u32 %s1, 4
      %s35 = int_to_ptr.hbm [resolvable:$true] %s34
      %s36 = sshll.u32 [#allocation5], 4
      %s37 = int_to_ptr.vmem [resolvable:$true] %s36
      %42 = dma.hbm_to_vmem [thread:$0]  %s35, 37632, %s37, [#allocation6], 128, 128, 8
    $region9: #{_fastnet_pallas.1} parent=1 // pred_fallthru
      _
    // Predicated region
    $region10: #{_fastnet_pallas.1} parent=1 // pred_check
      _
    $region11: #{_fastnet_pallas.1} parent=1 // pred_check_branch
      %44 = sbr.rel (0) target = $region13
    $region12: #{_fastnet_pallas.1} parent=1 // pred_region
      %46 = vsyncadd [#allocation6], 0
      %s48 = sshll.u32 %s2, 4
      %s49 = int_to_ptr.hbm [resolvable:$true] %s48
      %s50 = sshll.u32 [#allocation7], 4
      %s51 = int_to_ptr.vmem [resolvable:$true] %s50
      %53 = dma.hbm_to_vmem [thread:$0]  %s49, 32, %s51, [#allocation6]
    $region13: #{_fastnet_pallas.1} parent=1 // pred_fallthru
      _
    // Predicated region
    $region14: #{_fastnet_pallas.1} parent=1 // pred_check
      _
    $region15: #{_fastnet_pallas.1} parent=1 // pred_check_branch
      %55 = sbr.rel (0) target = $region17
    $region16: #{_fastnet_pallas.1} parent=1 // pred_region
      %57 = vsyncadd [#allocation9], 0
      %s58 = sshll.u32 %s3, 4
      %s59 = int_to_ptr.hbm [resolvable:$true] %s58
      %s60 = sshll.u32 [#allocation8], 4
      %s61 = int_to_ptr.vmem [resolvable:$true] %s60
      %66 = dma.hbm_to_vmem [thread:$0]  %s59, 2048, %s61, [#allocation9], 64, 64, 4
    $region17: #{_fastnet_pallas.1} parent=1 // pred_fallthru
      _
    // Predicated region
    $region18: #{_fastnet_pallas.1} parent=1 // pred_check
      _
    $region19: #{_fastnet_pallas.1} parent=1 // pred_check_branch
      %68 = sbr.rel (0) target = $region21
    $region20: #{_fastnet_pallas.1} parent=1 // pred_region
      %70 = vsyncadd [#allocation9], 0
      %s72 = sshll.u32 %s4, 4
      %s73 = int_to_ptr.hbm [resolvable:$true] %s72
      %s74 = sshll.u32 [#allocation10], 4
      %s75 = int_to_ptr.vmem [resolvable:$true] %s74
      %77 = dma.hbm_to_vmem [thread:$0]  %s73, 16, %s75, [#allocation9]
    $region21: #{_fastnet_pallas.1} parent=1 // pred_fallthru
      _
    // Predicated region
    $region22: #{_fastnet_pallas.1} parent=1 // pred_check
      _
    $region23: #{_fastnet_pallas.1} parent=1 // pred_check_branch
      %79 = sbr.rel (0) target = $region25
    $region24: #{_fastnet_pallas.1} parent=1 // pred_region
      _
    $region25: #{_fastnet_pallas.1} parent=1 // pred_fallthru
      _
    // Predicated region
    $region26: #{_fastnet_pallas.1} parent=1 // pred_check
      _
    $region27: #{_fastnet_pallas.1} parent=1 // pred_check_branch
      %81 = sbr.rel (0) target = $region29
    $region28: #{_fastnet_pallas.1} parent=1 // pred_region
      %83 = vsyncadd [#allocation12], 0
      %s85 = sshll.u32 %s6, 4
      %s86 = int_to_ptr.hbm [resolvable:$true] %s85
      %s87 = sshll.u32 [#allocation11], 4
      %s88 = int_to_ptr.vmem [resolvable:$true] %s87
      %90 = dma.hbm_to_vmem [thread:$0]  %s86, 16, %s88, [#allocation12]
    $region29: #{_fastnet_pallas.1} parent=1 // pred_fallthru
      _
    // Predicated region
    $region30: #{_fastnet_pallas.1} parent=1 // pred_check
      _
    $region31: #{_fastnet_pallas.1} parent=1 // pred_check_branch
      %92 = sbr.rel (0) target = $region33
    $region32: #{_fastnet_pallas.1} parent=1 // pred_region
      %94 = dma.done [#allocation3], 2432
    $region33: #{_fastnet_pallas.1} parent=1 // pred_fallthru
      _
    // Predicated region
    $region34: #{_fastnet_pallas.1} parent=1 // pred_check
      _
    $region35: #{_fastnet_pallas.1} parent=1 // pred_check_branch
      %96 = sbr.rel (0) target = $region37
    $region36: #{_fastnet_pallas.1} parent=1 // pred_region
      %98 = dma.done [#allocation6], 37632
    $region37: #{_fastnet_pallas.1} parent=1 // pred_fallthru
      _
    // Predicated region
    $region38: #{_fastnet_pallas.1} parent=1 // pred_check
      _
    $region39: #{_fastnet_pallas.1} parent=1 // pred_check_branch
      %100 = sbr.rel (0) target = $region41
    $region40: #{_fastnet_pallas.1} parent=1 // pred_region
      %102 = dma.done [#allocation6], 32
    $region41: #{_fastnet_pallas.1} parent=1 // pred_fallthru
      _
    // Predicated region
    $region42: #{_fastnet_pallas.1} parent=1 // pred_check
      _
    $region43: #{_fastnet_pallas.1} parent=1 // pred_check_branch
      %104 = sbr.rel (0) target = $region45
    $region44: #{_fastnet_pallas.1} parent=1 // pred_region
      %106 = dma.done [#allocation9], 2048
    $region45: #{_fastnet_pallas.1} parent=1 // pred_fallthru
      _
    // Predicated region
    $region46: #{_fastnet_pallas.1} parent=1 // pred_check
      _
    $region47: #{_fastnet_pallas.1} parent=1 // pred_check_branch
      %108 = sbr.rel (0) target = $region49
    $region48: #{_fastnet_pallas.1} parent=1 // pred_region
      %110 = dma.done [#allocation9], 16
    $region49: #{_fastnet_pallas.1} parent=1 // pred_fallthru
      _
    // Predicated region
    $region50: #{_fastnet_pallas.1} parent=1 // pred_check
      _
    $region51: #{_fastnet_pallas.1} parent=1 // pred_check_branch
      %112 = sbr.rel (0) target = $region53
    $region52: #{_fastnet_pallas.1} parent=1 // pred_region
      %114 = dma.done [#allocation12], 16
    $region53: #{_fastnet_pallas.1} parent=1 // pred_fallthru
      _
    %v116 = vld [vmem:[#allocation2] sm:$0xff]
    %v117 = vld [vmem:[#allocation2 + $0x8] sm:$0xff]
    %v118 = vld [vmem:[#allocation2 + $0x10] sm:$0xff]
    %v119 = vld [vmem:[#allocation2 + $0x18] sm:$0xff]
    %v120 = vld [vmem:[#allocation2 + $0x20] sm:$0x3f]
    %v121 = vld [vmem:[#allocation2 + $0x26] sm:$0xff]
    %v122 = vld [vmem:[#allocation2 + $0x2e] sm:$0xff]
    %v123 = vld [vmem:[#allocation2 + $0x36] sm:$0xff]
    %v124 = vld [vmem:[#allocation2 + $0x3e] sm:$0xff]
    %v125 = vld [vmem:[#allocation2 + $0x46] sm:$0x3f]
    %v126 = vld [vmem:[#allocation2 + $0x4c] sm:$0xff]
    %v127 = vld [vmem:[#allocation2 + $0x54] sm:$0xff]
    %v128 = vld [vmem:[#allocation2 + $0x5c] sm:$0xff]
    %v129 = vld [vmem:[#allocation2 + $0x64] sm:$0xff]
    %v130 = vld [vmem:[#allocation2 + $0x6c] sm:$0x3f]
    %v131 = vld [vmem:[#allocation2 + $0x72] sm:$0xff]
    %v132 = vld [vmem:[#allocation2 + $0x7a] sm:$0xff]
    %v133 = vld [vmem:[#allocation2 + $0x82] sm:$0xff]
    %v134 = vld [vmem:[#allocation2 + $0x8a] sm:$0xff]
    %v135 = vld [vmem:[#allocation2 + $0x92] sm:$0x3f]
    %156 = vst [vmem:[#allocation1] ss:$4 sm:$0xff] %v116
    %s157 = scalar_lea.vmem [#allocation1], 1
    %158 = vst [vmem:[%s157] ss:$4 sm:$0xff] %v121
    %s159 = scalar_lea.vmem [#allocation1], 2
    %160 = vst [vmem:[%s159] ss:$4 sm:$0xff] %v126
    %s161 = scalar_lea.vmem [#allocation1], 3
    %162 = vst [vmem:[%s161] ss:$4 sm:$0xff] %v131
    %s163 = scalar_lea.vmem [#allocation1], 32
    %164 = vst [vmem:[%s163] ss:$4 sm:$0xff] %v117
    %s165 = scalar_lea.vmem [#allocation1], 33
    %166 = vst [vmem:[%s165] ss:$4 sm:$0xff] %v122
    %s167 = scalar_lea.vmem [#allocation1], 34
    %168 = vst [vmem:[%s167] ss:$4 sm:$0xff] %v127
    %s169 = scalar_lea.vmem [#allocation1], 35
    %170 = vst [vmem:[%s169] ss:$4 sm:$0xff] %v132
    %v171 = vld.sshfl [vmem:[#allocation1] sm:$0xff pattern:$0x73625140]
    %v172 = vld.sshfl [vmem:[#allocation1 + $0x8] sm:$0xff pattern:$0x73625140]
    %v173 = vld.sshfl [vmem:[#allocation1 + $0x10] sm:$0xff pattern:$0x73625140]
    %v174 = vld.sshfl [vmem:[#allocation1 + $0x18] sm:$0xff pattern:$0x73625140]
    %v175 = vld.sshfl [vmem:[#allocation1 + $0x20] sm:$0xff pattern:$0x73625140]
    %v176 = vld.sshfl [vmem:[#allocation1 + $0x28] sm:$0xff pattern:$0x73625140]
    %v177 = vld.sshfl [vmem:[#allocation1 + $0x30] sm:$0xff pattern:$0x73625140]
    %v178 = vld.sshfl [vmem:[#allocation1 + $0x38] sm:$0xff pattern:$0x73625140]
    %179 = vst [vmem:[#allocation1] ss:$4 sm:$0xff] %v118
    %180 = vst [vmem:[%s157] ss:$4 sm:$0xff] %v123
    %181 = vst [vmem:[%s159] ss:$4 sm:$0xff] %v128
    %182 = vst [vmem:[%s161] ss:$4 sm:$0xff] %v133
    %183 = vst [vmem:[%s163] ss:$4 sm:$0xff] %v119
    %184 = vst [vmem:[%s165] ss:$4 sm:$0xff] %v124
    %185 = vst [vmem:[%s167] ss:$4 sm:$0xff] %v129
    %186 = vst [vmem:[%s169] ss:$4 sm:$0xff] %v134
    %v187 = vld.sshfl [vmem:[#allocation1] sm:$0xff pattern:$0x73625140]
    %v188 = vld.sshfl [vmem:[#allocation1 + $0x8] sm:$0xff pattern:$0x73625140]
    %v189 = vld.sshfl [vmem:[#allocation1 + $0x10] sm:$0xff pattern:$0x73625140]
    %v190 = vld.sshfl [vmem:[#allocation1 + $0x18] sm:$0xff pattern:$0x73625140]
    %v191 = vld.sshfl [vmem:[#allocation1 + $0x20] sm:$0xff pattern:$0x73625140]
    %v192 = vld.sshfl [vmem:[#allocation1 + $0x28] sm:$0xff pattern:$0x73625140]
    %v193 = vld.sshfl [vmem:[#allocation1 + $0x30] sm:$0xff pattern:$0x73625140]
    %v194 = vld.sshfl [vmem:[#allocation1 + $0x38] sm:$0xff pattern:$0x73625140]
    %195 = vst [vmem:[#allocation1] ss:$4 sm:$0xff] %v120
    %196 = vst [vmem:[%s157] ss:$4 sm:$0xff] %v125
    %197 = vst [vmem:[%s159] ss:$4 sm:$0xff] %v130
    %198 = vst [vmem:[%s161] ss:$4 sm:$0xff] %v135
    %v199 = vld.sshfl [vmem:[#allocation1] sm:$0xff pattern:$0x73625140]
    %v200 = vld.sshfl [vmem:[#allocation1 + $0x8] sm:$0xff pattern:$0x73625140]
    %v201 = vld.sshfl [vmem:[#allocation1 + $0x10] sm:$0xff pattern:$0x73625140]
    %v221 = vpack.c.bf16 %v171, %v171
    %v222 = vpack.c.bf16 %v172, %v172
    %v223 = vpack.c.bf16 %v173, %v173
    %v224 = vpack.c.bf16 %v174, %v174
    %v225 = vpack.c.bf16 %v175, %v175
    %v226 = vpack.c.bf16 %v176, %v176
    %v227 = vpack.c.bf16 %v177, %v177
    %v228 = vpack.c.bf16 %v178, %v178
    %v229 = vpack.c.bf16 %v187, %v187
    %v230 = vpack.c.bf16 %v188, %v188
    %v231 = vpack.c.bf16 %v189, %v189
    %v232 = vpack.c.bf16 %v190, %v190
    %v233 = vpack.c.bf16 %v191, %v191
    %v234 = vpack.c.bf16 %v192, %v192
    %v235 = vpack.c.bf16 %v193, %v193
    %v236 = vpack.c.bf16 %v194, %v194
    %v237 = vpack.c.bf16 %v199, %v199
    %v238 = vpack.c.bf16 %v200, %v200
    %v239 = vpack.c.bf16 %v201, %v201
    %v240 = vld [vmem:[#allocation5] sm:$0xff]
    %v241 = vld [vmem:[#allocation5 + $0x8] sm:$0xff]
    %v242 = vld [vmem:[#allocation5 + $0x10] sm:$0xff]
    %v243 = vld [vmem:[#allocation5 + $0x18] sm:$0xff]
    %v244 = vld [vmem:[#allocation5 + $0x20] sm:$0xff]
    %v245 = vld [vmem:[#allocation5 + $0x28] sm:$0xff]
    %v246 = vld [vmem:[#allocation5 + $0x30] sm:$0xff]
    %v247 = vld [vmem:[#allocation5 + $0x38] sm:$0xff]
    %v248 = vld [vmem:[#allocation5 + $0x40] sm:$0xff]
    %v249 = vld [vmem:[#allocation5 + $0x48] sm:$0xff]
    %v250 = vld [vmem:[#allocation5 + $0x50] sm:$0xff]
    %v251 = vld [vmem:[#allocation5 + $0x58] sm:$0xff]
    %v252 = vld [vmem:[#allocation5 + $0x60] sm:$0xff]
    %v253 = vld [vmem:[#allocation5 + $0x68] sm:$0xff]
    %v254 = vld [vmem:[#allocation5 + $0x70] sm:$0xff]
    %v255 = vld [vmem:[#allocation5 + $0x78] sm:$0xff]
    %v256 = vld [vmem:[#allocation5 + $0x80] sm:$0xff]
    %v257 = vld [vmem:[#allocation5 + $0x88] sm:$0xff]
    %v258 = vld [vmem:[#allocation5 + $0x90] sm:$0xff]
    %v259 = vld [vmem:[#allocation5 + $0x98] sm:$0xff]
    %v260 = vld [vmem:[#allocation5 + $0xa0] sm:$0xff]
    %v261 = vld [vmem:[#allocation5 + $0xa8] sm:$0xff]
    %v262 = vld [vmem:[#allocation5 + $0xb0] sm:$0xff]
    %v263 = vld [vmem:[#allocation5 + $0xb8] sm:$0xff]
    %v264 = vld [vmem:[#allocation5 + $0xc0] sm:$0xff]
    %v265 = vld [vmem:[#allocation5 + $0xc8] sm:$0xff]
    %v266 = vld [vmem:[#allocation5 + $0xd0] sm:$0xff]
    %v267 = vld [vmem:[#allocation5 + $0xd8] sm:$0xff]
    %v268 = vld [vmem:[#allocation5 + $0xe0] sm:$0xff]
    %v269 = vld [vmem:[#allocation5 + $0xe8] sm:$0xff]
    %v270 = vld [vmem:[#allocation5 + $0xf0] sm:$0xff]
    %v271 = vld [vmem:[#allocation5 + $0xf8] sm:$0xff]
    %v272 = vld [vmem:[#allocation5 + $0x100] sm:$0xff]
    %v273 = vld [vmem:[#allocation5 + $0x108] sm:$0xff]
    %v274 = vld [vmem:[#allocation5 + $0x110] sm:$0xff]
    %v275 = vld [vmem:[#allocation5 + $0x118] sm:$0xff]
    %v276 = vld [vmem:[#allocation5 + $0x120] sm:$0xff]
    %v277 = vld [vmem:[#allocation5 + $0x128] sm:$0xff]
    %v278 = vld [vmem:[#allocation5 + $0x130] sm:$0xff]
    %v279 = vld [vmem:[#allocation5 + $0x138] sm:$0xff]
    %v280 = vld [vmem:[#allocation5 + $0x140] sm:$0xff]
    %v281 = vld [vmem:[#allocation5 + $0x148] sm:$0xff]
    %v282 = vld [vmem:[#allocation5 + $0x150] sm:$0xff]
    %v283 = vld [vmem:[#allocation5 + $0x158] sm:$0xff]
    %v284 = vld [vmem:[#allocation5 + $0x160] sm:$0xff]
    %v285 = vld [vmem:[#allocation5 + $0x168] sm:$0xff]
    %v286 = vld [vmem:[#allocation5 + $0x170] sm:$0xff]
    %v287 = vld [vmem:[#allocation5 + $0x178] sm:$0xff]
    %v288 = vld [vmem:[#allocation5 + $0x180] sm:$0xff]
    %v289 = vld [vmem:[#allocation5 + $0x188] sm:$0xff]
    %v290 = vld [vmem:[#allocation5 + $0x190] sm:$0xff]
    %v291 = vld [vmem:[#allocation5 + $0x198] sm:$0xff]
    %v292 = vld [vmem:[#allocation5 + $0x1a0] sm:$0xff]
    %v293 = vld [vmem:[#allocation5 + $0x1a8] sm:$0xff]
    %v294 = vld [vmem:[#allocation5 + $0x1b0] sm:$0xff]
    %v295 = vld [vmem:[#allocation5 + $0x1b8] sm:$0xff]
    %v296 = vld [vmem:[#allocation5 + $0x1c0] sm:$0xff]
    %v297 = vld [vmem:[#allocation5 + $0x1c8] sm:$0xff]
    %v298 = vld [vmem:[#allocation5 + $0x1d0] sm:$0xff]
    %v299 = vld [vmem:[#allocation5 + $0x1d8] sm:$0xff]
    %v300 = vld [vmem:[#allocation5 + $0x1e0] sm:$0xff]
    %v301 = vld [vmem:[#allocation5 + $0x1e8] sm:$0xff]
    %v302 = vld [vmem:[#allocation5 + $0x1f0] sm:$0xff]
    %v303 = vld [vmem:[#allocation5 + $0x1f8] sm:$0xff]
    %v304 = vld [vmem:[#allocation5 + $0x200] sm:$0xff]
    %v305 = vld [vmem:[#allocation5 + $0x208] sm:$0xff]
    %v306 = vld [vmem:[#allocation5 + $0x210] sm:$0xff]
    %v307 = vld [vmem:[#allocation5 + $0x218] sm:$0xff]
    %v308 = vld [vmem:[#allocation5 + $0x220] sm:$0xff]
    %v309 = vld [vmem:[#allocation5 + $0x228] sm:$0xff]
    %v310 = vld [vmem:[#allocation5 + $0x230] sm:$0xff]
    %v311 = vld [vmem:[#allocation5 + $0x238] sm:$0xff]
    %v312 = vld [vmem:[#allocation5 + $0x240] sm:$0xff]
    %v313 = vld [vmem:[#allocation5 + $0x248] sm:$0xff]
    %v314 = vld [vmem:[#allocation5 + $0x250] sm:$0xff]
    %v315 = vld [vmem:[#allocation5 + $0x258] sm:$0xff]
    %v316 = vld [vmem:[#allocation5 + $0x260] sm:$0xff]
    %v317 = vld [vmem:[#allocation5 + $0x268] sm:$0xff]
    %v318 = vld [vmem:[#allocation5 + $0x270] sm:$0xff]
    %v319 = vld [vmem:[#allocation5 + $0x278] sm:$0xff]
    %v320 = vld [vmem:[#allocation5 + $0x280] sm:$0xff]
    %v321 = vld [vmem:[#allocation5 + $0x288] sm:$0xff]
    %v322 = vld [vmem:[#allocation5 + $0x290] sm:$0xff]
    %v323 = vld [vmem:[#allocation5 + $0x298] sm:$0xff]
    %v324 = vld [vmem:[#allocation5 + $0x2a0] sm:$0xff]
    %v325 = vld [vmem:[#allocation5 + $0x2a8] sm:$0xff]
    %v326 = vld [vmem:[#allocation5 + $0x2b0] sm:$0xff]
    %v327 = vld [vmem:[#allocation5 + $0x2b8] sm:$0xff]
    %v328 = vld [vmem:[#allocation5 + $0x2c0] sm:$0xff]
    %v329 = vld [vmem:[#allocation5 + $0x2c8] sm:$0xff]
    %v330 = vld [vmem:[#allocation5 + $0x2d0] sm:$0xff]
    %v331 = vld [vmem:[#allocation5 + $0x2d8] sm:$0xff]
    %v332 = vld [vmem:[#allocation5 + $0x2e0] sm:$0xff]
    %v333 = vld [vmem:[#allocation5 + $0x2e8] sm:$0xff]
    %v334 = vld [vmem:[#allocation5 + $0x2f0] sm:$0xff]
    %v335 = vld [vmem:[#allocation5 + $0x2f8] sm:$0xff]
    %v336 = vld [vmem:[#allocation5 + $0x300] sm:$0xff]
    %v337 = vld [vmem:[#allocation5 + $0x308] sm:$0xff]
    %v338 = vld [vmem:[#allocation5 + $0x310] sm:$0xff]
    %v339 = vld [vmem:[#allocation5 + $0x318] sm:$0xff]
    %v340 = vld [vmem:[#allocation5 + $0x320] sm:$0xff]
    %v341 = vld [vmem:[#allocation5 + $0x328] sm:$0xff]
    %v342 = vld [vmem:[#allocation5 + $0x330] sm:$0xff]
    %v343 = vld [vmem:[#allocation5 + $0x338] sm:$0xff]
    %v344 = vld [vmem:[#allocation5 + $0x340] sm:$0xff]
    %v345 = vld [vmem:[#allocation5 + $0x348] sm:$0xff]
    %v346 = vld [vmem:[#allocation5 + $0x350] sm:$0xff]
    %v347 = vld [vmem:[#allocation5 + $0x358] sm:$0xff]
    %v348 = vld [vmem:[#allocation5 + $0x360] sm:$0xff]
    %v349 = vld [vmem:[#allocation5 + $0x368] sm:$0xff]
    %v350 = vld [vmem:[#allocation5 + $0x370] sm:$0xff]
    %v351 = vld [vmem:[#allocation5 + $0x378] sm:$0xff]
    %v352 = vld [vmem:[#allocation5 + $0x380] sm:$0xff]
    %v353 = vld [vmem:[#allocation5 + $0x388] sm:$0xff]
    %v354 = vld [vmem:[#allocation5 + $0x390] sm:$0xff]
    %v355 = vld [vmem:[#allocation5 + $0x398] sm:$0xff]
    %v356 = vld [vmem:[#allocation5 + $0x3a0] sm:$0xff]
    %v357 = vld [vmem:[#allocation5 + $0x3a8] sm:$0xff]
    %v358 = vld [vmem:[#allocation5 + $0x3b0] sm:$0xff]
    %v359 = vld [vmem:[#allocation5 + $0x3b8] sm:$0xff]
    %v360 = vld [vmem:[#allocation5 + $0x3c0] sm:$0xff]
    %v361 = vld [vmem:[#allocation5 + $0x3c8] sm:$0xff]
    %v362 = vld [vmem:[#allocation5 + $0x3d0] sm:$0xff]
    %v363 = vld [vmem:[#allocation5 + $0x3d8] sm:$0xff]
    %v364 = vld [vmem:[#allocation5 + $0x3e0] sm:$0xff]
    %v365 = vld [vmem:[#allocation5 + $0x3e8] sm:$0xff]
    %v366 = vld [vmem:[#allocation5 + $0x3f0] sm:$0xff]
    %v367 = vld [vmem:[#allocation5 + $0x3f8] sm:$0xff]
    %v368 = vld [vmem:[#allocation5 + $0x400] sm:$0xff]
    %v369 = vld [vmem:[#allocation5 + $0x408] sm:$0xff]
    %v370 = vld [vmem:[#allocation5 + $0x410] sm:$0xff]
    %v371 = vld [vmem:[#allocation5 + $0x418] sm:$0xff]
    %v372 = vld [vmem:[#allocation5 + $0x420] sm:$0xff]
    %v373 = vld [vmem:[#allocation5 + $0x428] sm:$0xff]
    %v374 = vld [vmem:[#allocation5 + $0x430] sm:$0xff]
    %v375 = vld [vmem:[#allocation5 + $0x438] sm:$0xff]
    %v376 = vld [vmem:[#allocation5 + $0x440] sm:$0xff]
    %v377 = vld [vmem:[#allocation5 + $0x448] sm:$0xff]
    %v378 = vld [vmem:[#allocation5 + $0x450] sm:$0xff]
    %v379 = vld [vmem:[#allocation5 + $0x458] sm:$0xff]
    %v380 = vld [vmem:[#allocation5 + $0x460] sm:$0xff]
    %v381 = vld [vmem:[#allocation5 + $0x468] sm:$0xff]
    %v382 = vld [vmem:[#allocation5 + $0x470] sm:$0xff]
    %v383 = vld [vmem:[#allocation5 + $0x478] sm:$0xff]
    %v384 = vld [vmem:[#allocation5 + $0x480] sm:$0xff]
    %v385 = vld [vmem:[#allocation5 + $0x488] sm:$0xff]
    %v386 = vld [vmem:[#allocation5 + $0x490] sm:$0xff]
    %v387 = vld [vmem:[#allocation5 + $0x498] sm:$0xff]
    %v388 = vld [vmem:[#allocation5 + $0x4a0] sm:$0xff]
    %v389 = vld [vmem:[#allocation5 + $0x4a8] sm:$0xff]
    %v390 = vld [vmem:[#allocation5 + $0x4b0] sm:$0xff]
    %v391 = vld [vmem:[#allocation5 + $0x4b8] sm:$0xff]
    %v392 = vld [vmem:[#allocation5 + $0x4c0] sm:$0xff]
    %v393 = vld [vmem:[#allocation5 + $0x4c8] sm:$0xff]
    %v394 = vld [vmem:[#allocation5 + $0x4d0] sm:$0xff]
    %v395 = vld [vmem:[#allocation5 + $0x4d8] sm:$0xff]
    %v396 = vld [vmem:[#allocation5 + $0x4e0] sm:$0xff]
    %v397 = vld [vmem:[#allocation5 + $0x4e8] sm:$0xff]
    %v398 = vld [vmem:[#allocation5 + $0x4f0] sm:$0xff]
    %v399 = vld [vmem:[#allocation5 + $0x4f8] sm:$0xff]
    %v400 = vld [vmem:[#allocation5 + $0x500] sm:$0xff]
    %v401 = vld [vmem:[#allocation5 + $0x508] sm:$0xff]
    %v402 = vld [vmem:[#allocation5 + $0x510] sm:$0xff]
    %v403 = vld [vmem:[#allocation5 + $0x518] sm:$0xff]
    %v404 = vld [vmem:[#allocation5 + $0x520] sm:$0xff]
    %v405 = vld [vmem:[#allocation5 + $0x528] sm:$0xff]
    %v406 = vld [vmem:[#allocation5 + $0x530] sm:$0xff]
    %v407 = vld [vmem:[#allocation5 + $0x538] sm:$0xff]
    %v408 = vld [vmem:[#allocation5 + $0x540] sm:$0xff]
    %v409 = vld [vmem:[#allocation5 + $0x548] sm:$0xff]
    %v410 = vld [vmem:[#allocation5 + $0x550] sm:$0xff]
    %v411 = vld [vmem:[#allocation5 + $0x558] sm:$0xff]
    %v412 = vld [vmem:[#allocation5 + $0x560] sm:$0xff]
    %v413 = vld [vmem:[#allocation5 + $0x568] sm:$0xff]
    %v414 = vld [vmem:[#allocation5 + $0x570] sm:$0xff]
    %v415 = vld [vmem:[#allocation5 + $0x578] sm:$0xff]
    %v416 = vld [vmem:[#allocation5 + $0x580] sm:$0xff]
    %v417 = vld [vmem:[#allocation5 + $0x588] sm:$0xff]
    %v418 = vld [vmem:[#allocation5 + $0x590] sm:$0xff]
    %v419 = vld [vmem:[#allocation5 + $0x598] sm:$0xff]
    %v420 = vld [vmem:[#allocation5 + $0x5a0] sm:$0xff]
    %v421 = vld [vmem:[#allocation5 + $0x5a8] sm:$0xff]
    %v422 = vld [vmem:[#allocation5 + $0x5b0] sm:$0xff]
    %v423 = vld [vmem:[#allocation5 + $0x5b8] sm:$0xff]
    %v424 = vld [vmem:[#allocation5 + $0x5c0] sm:$0xff]
    %v425 = vld [vmem:[#allocation5 + $0x5c8] sm:$0xff]
    %v426 = vld [vmem:[#allocation5 + $0x5d0] sm:$0xff]
    %v427 = vld [vmem:[#allocation5 + $0x5d8] sm:$0xff]
    %v428 = vld [vmem:[#allocation5 + $0x5e0] sm:$0xff]
    %v429 = vld [vmem:[#allocation5 + $0x5e8] sm:$0xff]
    %v430 = vld [vmem:[#allocation5 + $0x5f0] sm:$0xff]
    %v431 = vld [vmem:[#allocation5 + $0x5f8] sm:$0xff]
    %v432 = vld [vmem:[#allocation5 + $0x600] sm:$0xff]
    %v433 = vld [vmem:[#allocation5 + $0x608] sm:$0xff]
    %v434 = vld [vmem:[#allocation5 + $0x610] sm:$0xff]
    %v435 = vld [vmem:[#allocation5 + $0x618] sm:$0xff]
    %v436 = vld [vmem:[#allocation5 + $0x620] sm:$0xff]
    %v437 = vld [vmem:[#allocation5 + $0x628] sm:$0xff]
    %v438 = vld [vmem:[#allocation5 + $0x630] sm:$0xff]
    %v439 = vld [vmem:[#allocation5 + $0x638] sm:$0xff]
    %v440 = vld [vmem:[#allocation5 + $0x640] sm:$0xff]
    %v441 = vld [vmem:[#allocation5 + $0x648] sm:$0xff]
    %v442 = vld [vmem:[#allocation5 + $0x650] sm:$0xff]
    %v443 = vld [vmem:[#allocation5 + $0x658] sm:$0xff]
    %v444 = vld [vmem:[#allocation5 + $0x660] sm:$0xff]
    %v445 = vld [vmem:[#allocation5 + $0x668] sm:$0xff]
    %v446 = vld [vmem:[#allocation5 + $0x670] sm:$0xff]
    %v447 = vld [vmem:[#allocation5 + $0x678] sm:$0xff]
    %v448 = vld [vmem:[#allocation5 + $0x680] sm:$0xff]
    %v449 = vld [vmem:[#allocation5 + $0x688] sm:$0xff]
    %v450 = vld [vmem:[#allocation5 + $0x690] sm:$0xff]
    %v451 = vld [vmem:[#allocation5 + $0x698] sm:$0xff]
    %v452 = vld [vmem:[#allocation5 + $0x6a0] sm:$0xff]
    %v453 = vld [vmem:[#allocation5 + $0x6a8] sm:$0xff]
    %v454 = vld [vmem:[#allocation5 + $0x6b0] sm:$0xff]
    %v455 = vld [vmem:[#allocation5 + $0x6b8] sm:$0xff]
    %v456 = vld [vmem:[#allocation5 + $0x6c0] sm:$0xff]
    %v457 = vld [vmem:[#allocation5 + $0x6c8] sm:$0xff]
    %v458 = vld [vmem:[#allocation5 + $0x6d0] sm:$0xff]
    %v459 = vld [vmem:[#allocation5 + $0x6d8] sm:$0xff]
    %v460 = vld [vmem:[#allocation5 + $0x6e0] sm:$0xff]
    %v461 = vld [vmem:[#allocation5 + $0x6e8] sm:$0xff]
    %v462 = vld [vmem:[#allocation5 + $0x6f0] sm:$0xff]
    %v463 = vld [vmem:[#allocation5 + $0x6f8] sm:$0xff]
    %v464 = vld [vmem:[#allocation5 + $0x700] sm:$0xff]
    %v465 = vld [vmem:[#allocation5 + $0x708] sm:$0xff]
    %v466 = vld [vmem:[#allocation5 + $0x710] sm:$0xff]
    %v467 = vld [vmem:[#allocation5 + $0x718] sm:$0xff]
    %v468 = vld [vmem:[#allocation5 + $0x720] sm:$0xff]
    %v469 = vld [vmem:[#allocation5 + $0x728] sm:$0xff]
    %v470 = vld [vmem:[#allocation5 + $0x730] sm:$0xff]
    %v471 = vld [vmem:[#allocation5 + $0x738] sm:$0xff]
    %v472 = vld [vmem:[#allocation5 + $0x740] sm:$0xff]
    %v473 = vld [vmem:[#allocation5 + $0x748] sm:$0xff]
    %v474 = vld [vmem:[#allocation5 + $0x750] sm:$0xff]
    %v475 = vld [vmem:[#allocation5 + $0x758] sm:$0xff]
    %v476 = vld [vmem:[#allocation5 + $0x760] sm:$0xff]
    %v477 = vld [vmem:[#allocation5 + $0x768] sm:$0xff]
    %v478 = vld [vmem:[#allocation5 + $0x770] sm:$0xff]
    %v479 = vld [vmem:[#allocation5 + $0x778] sm:$0xff]
    %v480 = vld [vmem:[#allocation5 + $0x780] sm:$0xff]
    %v481 = vld [vmem:[#allocation5 + $0x788] sm:$0xff]
    %v482 = vld [vmem:[#allocation5 + $0x790] sm:$0xff]
    %v483 = vld [vmem:[#allocation5 + $0x798] sm:$0xff]
    %v484 = vld [vmem:[#allocation5 + $0x7a0] sm:$0xff]
    %v485 = vld [vmem:[#allocation5 + $0x7a8] sm:$0xff]
    %v486 = vld [vmem:[#allocation5 + $0x7b0] sm:$0xff]
    %v487 = vld [vmem:[#allocation5 + $0x7b8] sm:$0xff]
    %v488 = vld [vmem:[#allocation5 + $0x7c0] sm:$0xff]
    %v489 = vld [vmem:[#allocation5 + $0x7c8] sm:$0xff]
    %v490 = vld [vmem:[#allocation5 + $0x7d0] sm:$0xff]
    %v491 = vld [vmem:[#allocation5 + $0x7d8] sm:$0xff]
    %v492 = vld [vmem:[#allocation5 + $0x7e0] sm:$0xff]
    %v493 = vld [vmem:[#allocation5 + $0x7e8] sm:$0xff]
    %v494 = vld [vmem:[#allocation5 + $0x7f0] sm:$0xff]
    %v495 = vld [vmem:[#allocation5 + $0x7f8] sm:$0xff]
    %v496 = vld [vmem:[#allocation5 + $0x800] sm:$0xff]
    %v497 = vld [vmem:[#allocation5 + $0x808] sm:$0xff]
    %v498 = vld [vmem:[#allocation5 + $0x810] sm:$0xff]
    %v499 = vld [vmem:[#allocation5 + $0x818] sm:$0xff]
    %v500 = vld [vmem:[#allocation5 + $0x820] sm:$0xff]
    %v501 = vld [vmem:[#allocation5 + $0x828] sm:$0xff]
    %v502 = vld [vmem:[#allocation5 + $0x830] sm:$0xff]
    %v503 = vld [vmem:[#allocation5 + $0x838] sm:$0xff]
    %v504 = vld [vmem:[#allocation5 + $0x840] sm:$0xff]
    %v505 = vld [vmem:[#allocation5 + $0x848] sm:$0xff]
    %v506 = vld [vmem:[#allocation5 + $0x850] sm:$0xff]
    %v507 = vld [vmem:[#allocation5 + $0x858] sm:$0xff]
    %v508 = vld [vmem:[#allocation5 + $0x860] sm:$0xff]
    %v509 = vld [vmem:[#allocation5 + $0x868] sm:$0xff]
    %v510 = vld [vmem:[#allocation5 + $0x870] sm:$0xff]
    %v511 = vld [vmem:[#allocation5 + $0x878] sm:$0xff]
    %v512 = vld [vmem:[#allocation5 + $0x880] sm:$0xff]
    %v513 = vld [vmem:[#allocation5 + $0x888] sm:$0xff]
    %v514 = vld [vmem:[#allocation5 + $0x890] sm:$0xff]
    %v515 = vld [vmem:[#allocation5 + $0x898] sm:$0xff]
    %v516 = vld [vmem:[#allocation5 + $0x8a0] sm:$0xff]
    %v517 = vld [vmem:[#allocation5 + $0x8a8] sm:$0xff]
    %v518 = vld [vmem:[#allocation5 + $0x8b0] sm:$0xff]
    %v519 = vld [vmem:[#allocation5 + $0x8b8] sm:$0xff]
    %v520 = vld [vmem:[#allocation5 + $0x8c0] sm:$0xff]
    %v521 = vld [vmem:[#allocation5 + $0x8c8] sm:$0xff]
    %v522 = vld [vmem:[#allocation5 + $0x8d0] sm:$0xff]
    %v523 = vld [vmem:[#allocation5 + $0x8d8] sm:$0xff]
    %v524 = vld [vmem:[#allocation5 + $0x8e0] sm:$0xff]
    %v525 = vld [vmem:[#allocation5 + $0x8e8] sm:$0xff]
    %v526 = vld [vmem:[#allocation5 + $0x8f0] sm:$0xff]
    %v527 = vld [vmem:[#allocation5 + $0x8f8] sm:$0xff]
    %v528 = vld [vmem:[#allocation5 + $0x900] sm:$0xff]
    %v529 = vld [vmem:[#allocation5 + $0x908] sm:$0xff]
    %v530 = vld [vmem:[#allocation5 + $0x910] sm:$0xff]
    %v531 = vld [vmem:[#allocation5 + $0x918] sm:$0xff]
    %v532 = vld [vmem:[#allocation5 + $0x920] sm:$0xff]
    %v533 = vld [vmem:[#allocation5 + $0x928] sm:$0xff]
    %v534 = vld [vmem:[#allocation7] sm:$0x3]
    %v536 = vperm.slane %v534, 0
    %v537 = vperm.slane %v534, 1
    %v834 = vunpack.c.l.b16 %v240
    %v835 = vunpack.c.h.b16 %v240
    %v836 = vunpack.c.l.b16 %v241
    %v837 = vunpack.c.h.b16 %v241
    %v838 = vunpack.c.l.b16 %v242
    %v839 = vunpack.c.h.b16 %v242
    %v840 = vunpack.c.l.b16 %v243
    %v841 = vunpack.c.h.b16 %v243
    %v842 = vunpack.c.l.b16 %v244
    %v843 = vunpack.c.h.b16 %v244
    %v844 = vunpack.c.l.b16 %v245
    %v845 = vunpack.c.h.b16 %v245
    %v846 = vunpack.c.l.b16 %v246
    %v847 = vunpack.c.h.b16 %v246
    %v848 = vunpack.c.l.b16 %v247
    %v849 = vunpack.c.h.b16 %v247
    %v850 = vunpack.c.l.b16 %v248
    %v851 = vunpack.c.h.b16 %v248
    %v852 = vunpack.c.l.b16 %v249
    %v853 = vunpack.c.h.b16 %v249
    %v854 = vunpack.c.l.b16 %v250
    %v855 = vunpack.c.h.b16 %v250
    %v856 = vunpack.c.l.b16 %v251
    %v857 = vunpack.c.h.b16 %v251
    %v858 = vunpack.c.l.b16 %v252
    %v859 = vunpack.c.h.b16 %v252
    %v860 = vunpack.c.l.b16 %v253
    %v861 = vunpack.c.h.b16 %v253
    %v862 = vunpack.c.l.b16 %v254
    %v863 = vunpack.c.h.b16 %v254
    %v864 = vunpack.c.l.b16 %v255
    %v865 = vunpack.c.h.b16 %v255
    %v866 = vunpack.c.l.b16 %v256
    %v867 = vunpack.c.h.b16 %v256
    %v868 = vunpack.c.l.b16 %v257
    %v869 = vunpack.c.h.b16 %v257
    %v870 = vunpack.c.l.b16 %v258
    %v871 = vunpack.c.h.b16 %v258
    %v872 = vunpack.c.l.b16 %v259
    %v873 = vunpack.c.h.b16 %v259
    %v874 = vunpack.c.l.b16 %v260
    %v875 = vunpack.c.h.b16 %v260
    %v876 = vunpack.c.l.b16 %v261
    %v877 = vunpack.c.h.b16 %v261
    %v878 = vunpack.c.l.b16 %v262
    %v879 = vunpack.c.h.b16 %v262
    %v880 = vunpack.c.l.b16 %v263
    %v881 = vunpack.c.h.b16 %v263
    %v882 = vunpack.c.l.b16 %v264
    %v883 = vunpack.c.h.b16 %v264
    %v884 = vunpack.c.l.b16 %v265
    %v885 = vunpack.c.h.b16 %v265
    %v886 = vunpack.c.l.b16 %v266
    %v887 = vunpack.c.h.b16 %v266
    %v888 = vunpack.c.l.b16 %v267
    %v889 = vunpack.c.h.b16 %v267
    %v890 = vunpack.c.l.b16 %v268
    %v891 = vunpack.c.h.b16 %v268
    %v892 = vunpack.c.l.b16 %v269
    %v893 = vunpack.c.h.b16 %v269
    %v894 = vunpack.c.l.b16 %v270
    %v895 = vunpack.c.h.b16 %v270
    %v896 = vunpack.c.l.b16 %v271
    %v897 = vunpack.c.h.b16 %v271
    %v898 = vunpack.c.l.b16 %v272
    %v899 = vunpack.c.h.b16 %v272
    %v900 = vunpack.c.l.b16 %v273
    %v901 = vunpack.c.h.b16 %v273
    %v902 = vunpack.c.l.b16 %v274
    %v903 = vunpack.c.h.b16 %v274
    %v904 = vunpack.c.l.b16 %v275
    %v905 = vunpack.c.h.b16 %v275
    %v906 = vunpack.c.l.b16 %v276
    %v907 = vunpack.c.h.b16 %v276
    %v908 = vunpack.c.l.b16 %v277
    %v909 = vunpack.c.h.b16 %v277
    %v910 = vunpack.c.l.b16 %v278
    %v911 = vunpack.c.h.b16 %v278
    %v912 = vunpack.c.l.b16 %v279
    %v913 = vunpack.c.h.b16 %v279
    %v914 = vunpack.c.l.b16 %v280
    %v915 = vunpack.c.h.b16 %v280
    %v916 = vunpack.c.l.b16 %v281
    %v917 = vunpack.c.h.b16 %v281
    %v918 = vunpack.c.l.b16 %v282
    %v919 = vunpack.c.h.b16 %v282
    %v920 = vunpack.c.l.b16 %v283
    %v921 = vunpack.c.h.b16 %v283
    %v922 = vunpack.c.l.b16 %v284
    %v923 = vunpack.c.h.b16 %v284
    %v924 = vunpack.c.l.b16 %v285
    %v925 = vunpack.c.h.b16 %v285
    %v926 = vunpack.c.l.b16 %v286
    %v927 = vunpack.c.h.b16 %v286
    %v928 = vunpack.c.l.b16 %v287
    %v929 = vunpack.c.h.b16 %v287
    %v930 = vunpack.c.l.b16 %v288
    %v931 = vunpack.c.h.b16 %v288
    %v932 = vunpack.c.l.b16 %v289
    %v933 = vunpack.c.h.b16 %v289
    %v934 = vunpack.c.l.b16 %v290
    %v935 = vunpack.c.h.b16 %v290
    %v936 = vunpack.c.l.b16 %v291
    %v937 = vunpack.c.h.b16 %v291
    %v938 = vunpack.c.l.b16 %v292
    %v939 = vunpack.c.h.b16 %v292
    %v940 = vunpack.c.l.b16 %v293
    %v941 = vunpack.c.h.b16 %v293
    %v942 = vunpack.c.l.b16 %v294
    %v943 = vunpack.c.h.b16 %v294
    %v944 = vunpack.c.l.b16 %v295
    %v945 = vunpack.c.h.b16 %v295
    %v946 = vunpack.c.l.b16 %v296
    %v947 = vunpack.c.h.b16 %v296
    %v948 = vunpack.c.l.b16 %v297
    %v949 = vunpack.c.h.b16 %v297
    %v950 = vunpack.c.l.b16 %v298
    %v951 = vunpack.c.h.b16 %v298
    %v952 = vunpack.c.l.b16 %v299
    %v953 = vunpack.c.h.b16 %v299
    %v954 = vunpack.c.l.b16 %v300
    %v955 = vunpack.c.h.b16 %v300
    %v956 = vunpack.c.l.b16 %v301
    %v957 = vunpack.c.h.b16 %v301
    %v958 = vunpack.c.l.b16 %v302
    %v959 = vunpack.c.h.b16 %v302
    %v960 = vunpack.c.l.b16 %v303
    %v961 = vunpack.c.h.b16 %v303
    %v962 = vunpack.c.l.b16 %v304
    %v963 = vunpack.c.h.b16 %v304
    %v964 = vunpack.c.l.b16 %v305
    %v965 = vunpack.c.h.b16 %v305
    %v966 = vunpack.c.l.b16 %v306
    %v967 = vunpack.c.h.b16 %v306
    %v968 = vunpack.c.l.b16 %v307
    %v969 = vunpack.c.h.b16 %v307
    %v970 = vunpack.c.l.b16 %v308
    %v971 = vunpack.c.h.b16 %v308
    %v972 = vunpack.c.l.b16 %v309
    %v973 = vunpack.c.h.b16 %v309
    %v974 = vunpack.c.l.b16 %v310
    %v975 = vunpack.c.h.b16 %v310
    %v976 = vunpack.c.l.b16 %v311
    %v977 = vunpack.c.h.b16 %v311
    %v978 = vunpack.c.l.b16 %v312
    %v979 = vunpack.c.h.b16 %v312
    %v980 = vunpack.c.l.b16 %v313
    %v981 = vunpack.c.h.b16 %v313
    %v982 = vunpack.c.l.b16 %v314
    %v983 = vunpack.c.h.b16 %v314
    %v984 = vunpack.c.l.b16 %v315
    %v985 = vunpack.c.h.b16 %v315
    %v986 = vunpack.c.l.b16 %v316
    %v987 = vunpack.c.h.b16 %v316
    %v988 = vunpack.c.l.b16 %v317
    %v989 = vunpack.c.h.b16 %v317
    %v990 = vunpack.c.l.b16 %v318
    %v991 = vunpack.c.h.b16 %v318
    %v992 = vunpack.c.l.b16 %v319
    %v993 = vunpack.c.h.b16 %v319
    %v994 = vunpack.c.l.b16 %v320
    %v995 = vunpack.c.h.b16 %v320
    %v996 = vunpack.c.l.b16 %v321
    %v997 = vunpack.c.h.b16 %v321
    %v998 = vunpack.c.l.b16 %v322
    %v999 = vunpack.c.h.b16 %v322
    %v1000 = vunpack.c.l.b16 %v323
    %v1001 = vunpack.c.h.b16 %v323
    %v1002 = vunpack.c.l.b16 %v324
    %v1003 = vunpack.c.h.b16 %v324
    %v1004 = vunpack.c.l.b16 %v325
    %v1005 = vunpack.c.h.b16 %v325
    %v1006 = vunpack.c.l.b16 %v326
    %v1007 = vunpack.c.h.b16 %v326
    %v1008 = vunpack.c.l.b16 %v327
    %v1009 = vunpack.c.h.b16 %v327
    %v1010 = vunpack.c.l.b16 %v328
    %v1011 = vunpack.c.h.b16 %v328
    %v1012 = vunpack.c.l.b16 %v329
    %v1013 = vunpack.c.h.b16 %v329
    %v1014 = vunpack.c.l.b16 %v330
    %v1015 = vunpack.c.h.b16 %v330
    %v1016 = vunpack.c.l.b16 %v331
    %v1017 = vunpack.c.h.b16 %v331
    %v1018 = vunpack.c.l.b16 %v332
    %v1019 = vunpack.c.h.b16 %v332
    %v1020 = vunpack.c.l.b16 %v333
    %v1021 = vunpack.c.h.b16 %v333
    %v1022 = vunpack.c.l.b16 %v334
    %v1023 = vunpack.c.h.b16 %v334
    %v1024 = vunpack.c.l.b16 %v335
    %v1025 = vunpack.c.h.b16 %v335
    %v1026 = vunpack.c.l.b16 %v336
    %v1027 = vunpack.c.h.b16 %v336
    %v1028 = vunpack.c.l.b16 %v337
    %v1029 = vunpack.c.h.b16 %v337
    %v1030 = vunpack.c.l.b16 %v338
    %v1031 = vunpack.c.h.b16 %v338
    %v1032 = vunpack.c.l.b16 %v339
    %v1033 = vunpack.c.h.b16 %v339
    %v1034 = vunpack.c.l.b16 %v340
    %v1035 = vunpack.c.h.b16 %v340
    %v1036 = vunpack.c.l.b16 %v341
    %v1037 = vunpack.c.h.b16 %v341
    %v1038 = vunpack.c.l.b16 %v342
    %v1039 = vunpack.c.h.b16 %v342
    %v1040 = vunpack.c.l.b16 %v343
    %v1041 = vunpack.c.h.b16 %v343
    %v1042 = vunpack.c.l.b16 %v344
    %v1043 = vunpack.c.h.b16 %v344
    %v1044 = vunpack.c.l.b16 %v345
    %v1045 = vunpack.c.h.b16 %v345
    %v1046 = vunpack.c.l.b16 %v346
    %v1047 = vunpack.c.h.b16 %v346
    %v1048 = vunpack.c.l.b16 %v347
    %v1049 = vunpack.c.h.b16 %v347
    %v1050 = vunpack.c.l.b16 %v348
    %v1051 = vunpack.c.h.b16 %v348
    %v1052 = vunpack.c.l.b16 %v349
    %v1053 = vunpack.c.h.b16 %v349
    %v1054 = vunpack.c.l.b16 %v350
    %v1055 = vunpack.c.h.b16 %v350
    %v1056 = vunpack.c.l.b16 %v351
    %v1057 = vunpack.c.h.b16 %v351
    %v1058 = vunpack.c.l.b16 %v352
    %v1059 = vunpack.c.h.b16 %v352
    %v1060 = vunpack.c.l.b16 %v353
    %v1061 = vunpack.c.h.b16 %v353
    %v1062 = vunpack.c.l.b16 %v354
    %v1063 = vunpack.c.h.b16 %v354
    %v1064 = vunpack.c.l.b16 %v355
    %v1065 = vunpack.c.h.b16 %v355
    %v1066 = vunpack.c.l.b16 %v356
    %v1067 = vunpack.c.h.b16 %v356
    %v1068 = vunpack.c.l.b16 %v357
    %v1069 = vunpack.c.h.b16 %v357
    %v1070 = vunpack.c.l.b16 %v358
    %v1071 = vunpack.c.h.b16 %v358
    %v1072 = vunpack.c.l.b16 %v359
    %v1073 = vunpack.c.h.b16 %v359
    %v1074 = vunpack.c.l.b16 %v360
    %v1075 = vunpack.c.h.b16 %v360
    %v1076 = vunpack.c.l.b16 %v361
    %v1077 = vunpack.c.h.b16 %v361
    %v1078 = vunpack.c.l.b16 %v362
    %v1079 = vunpack.c.h.b16 %v362
    %v1080 = vunpack.c.l.b16 %v363
    %v1081 = vunpack.c.h.b16 %v363
    %v1082 = vunpack.c.l.b16 %v364
    %v1083 = vunpack.c.h.b16 %v364
    %v1084 = vunpack.c.l.b16 %v365
    %v1085 = vunpack.c.h.b16 %v365
    %v1086 = vunpack.c.l.b16 %v366
    %v1087 = vunpack.c.h.b16 %v366
    %v1088 = vunpack.c.l.b16 %v367
    %v1089 = vunpack.c.h.b16 %v367
    %v1090 = vunpack.c.l.b16 %v368
    %v1091 = vunpack.c.h.b16 %v368
    %v1092 = vunpack.c.l.b16 %v369
    %v1093 = vunpack.c.h.b16 %v369
    %v1094 = vunpack.c.l.b16 %v370
    %v1095 = vunpack.c.h.b16 %v370
    %v1096 = vunpack.c.l.b16 %v371
    %v1097 = vunpack.c.h.b16 %v371
    %v1098 = vunpack.c.l.b16 %v372
    %v1099 = vunpack.c.h.b16 %v372
    %v1100 = vunpack.c.l.b16 %v373
    %v1101 = vunpack.c.h.b16 %v373
    %v1102 = vunpack.c.l.b16 %v374
    %v1103 = vunpack.c.h.b16 %v374
    %v1104 = vunpack.c.l.b16 %v375
    %v1105 = vunpack.c.h.b16 %v375
    %v1106 = vunpack.c.l.b16 %v376
    %v1107 = vunpack.c.h.b16 %v376
    %v1108 = vunpack.c.l.b16 %v377
    %v1109 = vunpack.c.h.b16 %v377
    %v1110 = vunpack.c.l.b16 %v378
    %v1111 = vunpack.c.h.b16 %v378
    %v1112 = vunpack.c.l.b16 %v379
    %v1113 = vunpack.c.h.b16 %v379
    %v1114 = vunpack.c.l.b16 %v380
    %v1115 = vunpack.c.h.b16 %v380
    %v1116 = vunpack.c.l.b16 %v381
    %v1117 = vunpack.c.h.b16 %v381
    %v1118 = vunpack.c.l.b16 %v382
    %v1119 = vunpack.c.h.b16 %v382
    %v1120 = vunpack.c.l.b16 %v383
    %v1121 = vunpack.c.h.b16 %v383
    %v1122 = vunpack.c.l.b16 %v384
    %v1123 = vunpack.c.h.b16 %v384
    %v1124 = vunpack.c.l.b16 %v385
    %v1125 = vunpack.c.h.b16 %v385
    %v1126 = vunpack.c.l.b16 %v386
    %v1127 = vunpack.c.h.b16 %v386
    %v1128 = vunpack.c.l.b16 %v387
    %v1129 = vunpack.c.h.b16 %v387
    %v1130 = vunpack.c.l.b16 %v388
    %v1131 = vunpack.c.h.b16 %v388
    %v1132 = vunpack.c.l.b16 %v389
    %v1133 = vunpack.c.h.b16 %v389
    %v1134 = vunpack.c.l.b16 %v390
    %v1135 = vunpack.c.h.b16 %v390
    %v1136 = vunpack.c.l.b16 %v391
    %v1137 = vunpack.c.h.b16 %v391
    %v1138 = vunpack.c.l.b16 %v392
    %v1139 = vunpack.c.h.b16 %v392
    %v1140 = vunpack.c.l.b16 %v393
    %v1141 = vunpack.c.h.b16 %v393
    %v1142 = vunpack.c.l.b16 %v394
    %v1143 = vunpack.c.h.b16 %v394
    %v1144 = vunpack.c.l.b16 %v395
    %v1145 = vunpack.c.h.b16 %v395
    %v1146 = vunpack.c.l.b16 %v396
    %v1147 = vunpack.c.h.b16 %v396
    %v1148 = vunpack.c.l.b16 %v397
    %v1149 = vunpack.c.h.b16 %v397
    %v1150 = vunpack.c.l.b16 %v398
    %v1151 = vunpack.c.h.b16 %v398
    %v1152 = vunpack.c.l.b16 %v399
    %v1153 = vunpack.c.h.b16 %v399
    %v1154 = vunpack.c.l.b16 %v400
    %v1155 = vunpack.c.h.b16 %v400
    %v1156 = vunpack.c.l.b16 %v401
    %v1157 = vunpack.c.h.b16 %v401
    %v1158 = vunpack.c.l.b16 %v402
    %v1159 = vunpack.c.h.b16 %v402
    %v1160 = vunpack.c.l.b16 %v403
    %v1161 = vunpack.c.h.b16 %v403
    %v1162 = vunpack.c.l.b16 %v404
    %v1163 = vunpack.c.h.b16 %v404
    %v1164 = vunpack.c.l.b16 %v405
    %v1165 = vunpack.c.h.b16 %v405
    %v1166 = vunpack.c.l.b16 %v406
    %v1167 = vunpack.c.h.b16 %v406
    %v1168 = vunpack.c.l.b16 %v407
    %v1169 = vunpack.c.h.b16 %v407
    %v1170 = vunpack.c.l.b16 %v408
    %v1171 = vunpack.c.h.b16 %v408
    %v1172 = vunpack.c.l.b16 %v409
    %v1173 = vunpack.c.h.b16 %v409
    %v1174 = vunpack.c.l.b16 %v410
    %v1175 = vunpack.c.h.b16 %v410
    %v1176 = vunpack.c.l.b16 %v411
    %v1177 = vunpack.c.h.b16 %v411
    %v1178 = vunpack.c.l.b16 %v412
    %v1179 = vunpack.c.h.b16 %v412
    %v1180 = vunpack.c.l.b16 %v413
    %v1181 = vunpack.c.h.b16 %v413
    %v1182 = vunpack.c.l.b16 %v414
    %v1183 = vunpack.c.h.b16 %v414
    %v1184 = vunpack.c.l.b16 %v415
    %v1185 = vunpack.c.h.b16 %v415
    %v1186 = vunpack.c.l.b16 %v416
    %v1187 = vunpack.c.h.b16 %v416
    %v1188 = vunpack.c.l.b16 %v417
    %v1189 = vunpack.c.h.b16 %v417
    %v1190 = vunpack.c.l.b16 %v418
    %v1191 = vunpack.c.h.b16 %v418
    %v1192 = vunpack.c.l.b16 %v419
    %v1193 = vunpack.c.h.b16 %v419
    %v1194 = vunpack.c.l.b16 %v420
    %v1195 = vunpack.c.h.b16 %v420
    %v1196 = vunpack.c.l.b16 %v421
    %v1197 = vunpack.c.h.b16 %v421
    %v1198 = vunpack.c.l.b16 %v422
    %v1199 = vunpack.c.h.b16 %v422
    %v1200 = vunpack.c.l.b16 %v423
    %v1201 = vunpack.c.h.b16 %v423
    %v1202 = vunpack.c.l.b16 %v424
    %v1203 = vunpack.c.h.b16 %v424
    %v1204 = vunpack.c.l.b16 %v425
    %v1205 = vunpack.c.h.b16 %v425
    %v1206 = vunpack.c.l.b16 %v426
    %v1207 = vunpack.c.h.b16 %v426
    %v1208 = vunpack.c.l.b16 %v427
    %v1209 = vunpack.c.h.b16 %v427
    %v1210 = vunpack.c.l.b16 %v428
    %v1211 = vunpack.c.h.b16 %v428
    %v1212 = vunpack.c.l.b16 %v429
    %v1213 = vunpack.c.h.b16 %v429
    %v1214 = vunpack.c.l.b16 %v430
    %v1215 = vunpack.c.h.b16 %v430
    %v1216 = vunpack.c.l.b16 %v431
    %v1217 = vunpack.c.h.b16 %v431
    %v1218 = vunpack.c.l.b16 %v432
    %v1219 = vunpack.c.h.b16 %v432
    %v1220 = vunpack.c.l.b16 %v433
    %v1221 = vunpack.c.h.b16 %v433
    %v1222 = vunpack.c.l.b16 %v434
    %v1223 = vunpack.c.h.b16 %v434
    %v1224 = vunpack.c.l.b16 %v435
    %v1225 = vunpack.c.h.b16 %v435
    %v1226 = vunpack.c.l.b16 %v436
    %v1227 = vunpack.c.h.b16 %v436
    %v1228 = vunpack.c.l.b16 %v437
    %v1229 = vunpack.c.h.b16 %v437
    %v1230 = vunpack.c.l.b16 %v438
    %v1231 = vunpack.c.h.b16 %v438
    %v1232 = vunpack.c.l.b16 %v439
    %v1233 = vunpack.c.h.b16 %v439
    %v1234 = vunpack.c.l.b16 %v440
    %v1235 = vunpack.c.h.b16 %v440
    %v1236 = vunpack.c.l.b16 %v441
    %v1237 = vunpack.c.h.b16 %v441
    %v1238 = vunpack.c.l.b16 %v442
    %v1239 = vunpack.c.h.b16 %v442
    %v1240 = vunpack.c.l.b16 %v443
    %v1241 = vunpack.c.h.b16 %v443
    %v1242 = vunpack.c.l.b16 %v444
    %v1243 = vunpack.c.h.b16 %v444
    %v1244 = vunpack.c.l.b16 %v445
    %v1245 = vunpack.c.h.b16 %v445
    %v1246 = vunpack.c.l.b16 %v446
    %v1247 = vunpack.c.h.b16 %v446
    %v1248 = vunpack.c.l.b16 %v447
    %v1249 = vunpack.c.h.b16 %v447
    %v1250 = vunpack.c.l.b16 %v448
    %v1251 = vunpack.c.h.b16 %v448
    %v1252 = vunpack.c.l.b16 %v449
    %v1253 = vunpack.c.h.b16 %v449
    %v1254 = vunpack.c.l.b16 %v450
    %v1255 = vunpack.c.h.b16 %v450
    %v1256 = vunpack.c.l.b16 %v451
    %v1257 = vunpack.c.h.b16 %v451
    %v1258 = vunpack.c.l.b16 %v452
    %v1259 = vunpack.c.h.b16 %v452
    %v1260 = vunpack.c.l.b16 %v453
    %v1261 = vunpack.c.h.b16 %v453
    %v1262 = vunpack.c.l.b16 %v454
    %v1263 = vunpack.c.h.b16 %v454
    %v1264 = vunpack.c.l.b16 %v455
    %v1265 = vunpack.c.h.b16 %v455
    %v1266 = vunpack.c.l.b16 %v456
    %v1267 = vunpack.c.h.b16 %v456
    %v1268 = vunpack.c.l.b16 %v457
    %v1269 = vunpack.c.h.b16 %v457
    %v1270 = vunpack.c.l.b16 %v458
    %v1271 = vunpack.c.h.b16 %v458
    %v1272 = vunpack.c.l.b16 %v459
    %v1273 = vunpack.c.h.b16 %v459
    %v1274 = vunpack.c.l.b16 %v460
    %v1275 = vunpack.c.h.b16 %v460
    %v1276 = vunpack.c.l.b16 %v461
    %v1277 = vunpack.c.h.b16 %v461
    %v1278 = vunpack.c.l.b16 %v462
    %v1279 = vunpack.c.h.b16 %v462
    %v1280 = vunpack.c.l.b16 %v463
    %v1281 = vunpack.c.h.b16 %v463
    %v1282 = vunpack.c.l.b16 %v464
    %v1283 = vunpack.c.h.b16 %v464
    %v1284 = vunpack.c.l.b16 %v465
    %v1285 = vunpack.c.h.b16 %v465
    %v1286 = vunpack.c.l.b16 %v466
    %v1287 = vunpack.c.h.b16 %v466
    %v1288 = vunpack.c.l.b16 %v467
    %v1289 = vunpack.c.h.b16 %v467
    %v1290 = vunpack.c.l.b16 %v468
    %v1291 = vunpack.c.h.b16 %v468
    %v1292 = vunpack.c.l.b16 %v469
    %v1293 = vunpack.c.h.b16 %v469
    %v1294 = vunpack.c.l.b16 %v470
    %v1295 = vunpack.c.h.b16 %v470
    %v1296 = vunpack.c.l.b16 %v471
    %v1297 = vunpack.c.h.b16 %v471
    %v1298 = vunpack.c.l.b16 %v472
    %v1299 = vunpack.c.h.b16 %v472
    %v1300 = vunpack.c.l.b16 %v473
    %v1301 = vunpack.c.h.b16 %v473
    %v1302 = vunpack.c.l.b16 %v474
    %v1303 = vunpack.c.h.b16 %v474
    %v1304 = vunpack.c.l.b16 %v475
    %v1305 = vunpack.c.h.b16 %v475
    %v1306 = vunpack.c.l.b16 %v476
    %v1307 = vunpack.c.h.b16 %v476
    %v1308 = vunpack.c.l.b16 %v477
    %v1309 = vunpack.c.h.b16 %v477
    %v1310 = vunpack.c.l.b16 %v478
    %v1311 = vunpack.c.h.b16 %v478
    %v1312 = vunpack.c.l.b16 %v479
    %v1313 = vunpack.c.h.b16 %v479
    %v1314 = vunpack.c.l.b16 %v480
    %v1315 = vunpack.c.h.b16 %v480
    %v1316 = vunpack.c.l.b16 %v481
    %v1317 = vunpack.c.h.b16 %v481
    %v1318 = vunpack.c.l.b16 %v482
    %v1319 = vunpack.c.h.b16 %v482
    %v1320 = vunpack.c.l.b16 %v483
    %v1321 = vunpack.c.h.b16 %v483
    %v1322 = vunpack.c.l.b16 %v484
    %v1323 = vunpack.c.h.b16 %v484
    %v1324 = vunpack.c.l.b16 %v485
    %v1325 = vunpack.c.h.b16 %v485
    %v1326 = vunpack.c.l.b16 %v486
    %v1327 = vunpack.c.h.b16 %v486
    %v1328 = vunpack.c.l.b16 %v487
    %v1329 = vunpack.c.h.b16 %v487
    %v1330 = vunpack.c.l.b16 %v488
    %v1331 = vunpack.c.h.b16 %v488
    %v1332 = vunpack.c.l.b16 %v489
    %v1333 = vunpack.c.h.b16 %v489
    %v1334 = vunpack.c.l.b16 %v490
    %v1335 = vunpack.c.h.b16 %v490
    %v1336 = vunpack.c.l.b16 %v491
    %v1337 = vunpack.c.h.b16 %v491
    %v1338 = vunpack.c.l.b16 %v492
    %v1339 = vunpack.c.h.b16 %v492
    %v1340 = vunpack.c.l.b16 %v493
    %v1341 = vunpack.c.h.b16 %v493
    %v1342 = vunpack.c.l.b16 %v494
    %v1343 = vunpack.c.h.b16 %v494
    %v1344 = vunpack.c.l.b16 %v495
    %v1345 = vunpack.c.h.b16 %v495
    %v1346 = vunpack.c.l.b16 %v496
    %v1347 = vunpack.c.h.b16 %v496
    %v1348 = vunpack.c.l.b16 %v497
    %v1349 = vunpack.c.h.b16 %v497
    %v1350 = vunpack.c.l.b16 %v498
    %v1351 = vunpack.c.h.b16 %v498
    %v1352 = vunpack.c.l.b16 %v499
    %v1353 = vunpack.c.h.b16 %v499
    %v1354 = vunpack.c.l.b16 %v500
    %v1355 = vunpack.c.h.b16 %v500
    %v1356 = vunpack.c.l.b16 %v501
    %v1357 = vunpack.c.h.b16 %v501
    %v1358 = vunpack.c.l.b16 %v502
    %v1359 = vunpack.c.h.b16 %v502
    %v1360 = vunpack.c.l.b16 %v503
    %v1361 = vunpack.c.h.b16 %v503
    %v1362 = vunpack.c.l.b16 %v504
    %v1363 = vunpack.c.h.b16 %v504
    %v1364 = vunpack.c.l.b16 %v505
    %v1365 = vunpack.c.h.b16 %v505
    %v1366 = vunpack.c.l.b16 %v506
    %v1367 = vunpack.c.h.b16 %v506
    %v1368 = vunpack.c.l.b16 %v507
    %v1369 = vunpack.c.h.b16 %v507
    %v1370 = vunpack.c.l.b16 %v508
    %v1371 = vunpack.c.h.b16 %v508
    %v1372 = vunpack.c.l.b16 %v509
    %v1373 = vunpack.c.h.b16 %v509
    %v1374 = vunpack.c.l.b16 %v510
    %v1375 = vunpack.c.h.b16 %v510
    %v1376 = vunpack.c.l.b16 %v511
    %v1377 = vunpack.c.h.b16 %v511
    %v1378 = vunpack.c.l.b16 %v512
    %v1379 = vunpack.c.h.b16 %v512
    %v1380 = vunpack.c.l.b16 %v513
    %v1381 = vunpack.c.h.b16 %v513
    %v1382 = vunpack.c.l.b16 %v514
    %v1383 = vunpack.c.h.b16 %v514
    %v1384 = vunpack.c.l.b16 %v515
    %v1385 = vunpack.c.h.b16 %v515
    %v1386 = vunpack.c.l.b16 %v516
    %v1387 = vunpack.c.h.b16 %v516
    %v1388 = vunpack.c.l.b16 %v517
    %v1389 = vunpack.c.h.b16 %v517
    %v1390 = vunpack.c.l.b16 %v518
    %v1391 = vunpack.c.h.b16 %v518
    %v1392 = vunpack.c.l.b16 %v519
    %v1393 = vunpack.c.h.b16 %v519
    %v1394 = vunpack.c.l.b16 %v520
    %v1395 = vunpack.c.h.b16 %v520
    %v1396 = vunpack.c.l.b16 %v521
    %v1397 = vunpack.c.h.b16 %v521
    %v1398 = vunpack.c.l.b16 %v522
    %v1399 = vunpack.c.h.b16 %v522
    %v1400 = vunpack.c.l.b16 %v523
    %v1401 = vunpack.c.h.b16 %v523
    %v1402 = vunpack.c.l.b16 %v524
    %v1403 = vunpack.c.h.b16 %v524
    %v1404 = vunpack.c.l.b16 %v525
    %v1405 = vunpack.c.h.b16 %v525
    %v1406 = vunpack.c.l.b16 %v526
    %v1407 = vunpack.c.h.b16 %v526
    %v1408 = vunpack.c.l.b16 %v527
    %v1409 = vunpack.c.h.b16 %v527
    %v1410 = vunpack.c.l.b16 %v528
    %v1411 = vunpack.c.h.b16 %v528
    %v1412 = vunpack.c.l.b16 %v529
    %v1413 = vunpack.c.h.b16 %v529
    %v1414 = vunpack.c.l.b16 %v530
    %v1415 = vunpack.c.h.b16 %v530
    %v1416 = vunpack.c.l.b16 %v531
    %v1417 = vunpack.c.h.b16 %v531
    %v1418 = vunpack.c.l.b16 %v532
    %v1419 = vunpack.c.h.b16 %v532
    %v1420 = vunpack.c.l.b16 %v533
    %v1421 = vunpack.c.h.b16 %v533
    %v1422 = vpack.c.b16 %v836, %v834
    %v1423 = vpack.c.b16 %v837, %v835
    %v1424 = vpack.c.b16 %v840, %v838
    %v1425 = vpack.c.b16 %v841, %v839
    %v1426 = vpack.c.b16 %v844, %v842
    %v1427 = vpack.c.b16 %v845, %v843
    %v1428 = vpack.c.b16 %v848, %v846
    %v1429 = vpack.c.b16 %v849, %v847
    %v1430 = vpack.c.b16 %v852, %v850
    %v1431 = vpack.c.b16 %v853, %v851
    %v1432 = vpack.c.b16 %v856, %v854
    %v1433 = vpack.c.b16 %v857, %v855
    %v1434 = vpack.c.b16 %v860, %v858
    %v1435 = vpack.c.b16 %v861, %v859
    %v1436 = vpack.c.b16 %v864, %v862
    %v1437 = vpack.c.b16 %v865, %v863
    %v1438 = vpack.c.b16 %v868, %v866
    %v1439 = vpack.c.b16 %v869, %v867
    %v1440 = vpack.c.b16 %v872, %v870
    %v1441 = vpack.c.b16 %v873, %v871
    %v1442 = vpack.c.b16 %v876, %v874
    %v1443 = vpack.c.b16 %v877, %v875
    %v1444 = vpack.c.b16 %v880, %v878
    %v1445 = vpack.c.b16 %v881, %v879
    %v1446 = vpack.c.b16 %v884, %v882
    %v1447 = vpack.c.b16 %v885, %v883
    %v1448 = vpack.c.b16 %v888, %v886
    %v1449 = vpack.c.b16 %v889, %v887
    %v1450 = vpack.c.b16 %v892, %v890
    %v1451 = vpack.c.b16 %v893, %v891
    %v1452 = vpack.c.b16 %v896, %v894
    %v1453 = vpack.c.b16 %v897, %v895
    %v1454 = vpack.c.b16 %v900, %v898
    %v1455 = vpack.c.b16 %v901, %v899
    %v1456 = vpack.c.b16 %v904, %v902
    %v1457 = vpack.c.b16 %v905, %v903
    %v1458 = vpack.c.b16 %v908, %v906
    %v1459 = vpack.c.b16 %v909, %v907
    %v1460 = vpack.c.b16 %v912, %v910
    %v1461 = vpack.c.b16 %v913, %v911
    %v1462 = vpack.c.b16 %v916, %v914
    %v1463 = vpack.c.b16 %v917, %v915
    %v1464 = vpack.c.b16 %v920, %v918
    %v1465 = vpack.c.b16 %v921, %v919
    %v1466 = vpack.c.b16 %v924, %v922
    %v1467 = vpack.c.b16 %v925, %v923
    %v1468 = vpack.c.b16 %v928, %v926
    %v1469 = vpack.c.b16 %v929, %v927
    %v1470 = vpack.c.b16 %v932, %v930
    %v1471 = vpack.c.b16 %v933, %v931
    %v1472 = vpack.c.b16 %v936, %v934
    %v1473 = vpack.c.b16 %v937, %v935
    %v1474 = vpack.c.b16 %v940, %v938
    %v1475 = vpack.c.b16 %v941, %v939
    %v1476 = vpack.c.b16 %v944, %v942
    %v1477 = vpack.c.b16 %v945, %v943
    %v1478 = vpack.c.b16 %v948, %v946
    %v1479 = vpack.c.b16 %v949, %v947
    %v1480 = vpack.c.b16 %v952, %v950
    %v1481 = vpack.c.b16 %v953, %v951
    %v1482 = vpack.c.b16 %v956, %v954
    %v1483 = vpack.c.b16 %v957, %v955
    %v1484 = vpack.c.b16 %v960, %v958
    %v1485 = vpack.c.b16 %v961, %v959
    %v1486 = vpack.c.b16 %v964, %v962
    %v1487 = vpack.c.b16 %v965, %v963
    %v1488 = vpack.c.b16 %v968, %v966
    %v1489 = vpack.c.b16 %v969, %v967
    %v1490 = vpack.c.b16 %v972, %v970
    %v1491 = vpack.c.b16 %v973, %v971
    %v1492 = vpack.c.b16 %v976, %v974
    %v1493 = vpack.c.b16 %v977, %v975
    %v1494 = vpack.c.b16 %v980, %v978
    %v1495 = vpack.c.b16 %v981, %v979
    %v1496 = vpack.c.b16 %v984, %v982
    %v1497 = vpack.c.b16 %v985, %v983
    %v1498 = vpack.c.b16 %v988, %v986
    %v1499 = vpack.c.b16 %v989, %v987
    %v1500 = vpack.c.b16 %v992, %v990
    %v1501 = vpack.c.b16 %v993, %v991
    %v1502 = vpack.c.b16 %v996, %v994
    %v1503 = vpack.c.b16 %v997, %v995
    %v1504 = vpack.c.b16 %v1000, %v998
    %v1505 = vpack.c.b16 %v1001, %v999
    %v1506 = vpack.c.b16 %v1004, %v1002
    %v1507 = vpack.c.b16 %v1005, %v1003
    %v1508 = vpack.c.b16 %v1008, %v1006
    %v1509 = vpack.c.b16 %v1009, %v1007
    %v1510 = vpack.c.b16 %v1012, %v1010
    %v1511 = vpack.c.b16 %v1013, %v1011
    %v1512 = vpack.c.b16 %v1016, %v1014
    %v1513 = vpack.c.b16 %v1017, %v1015
    %v1514 = vpack.c.b16 %v1020, %v1018
    %v1515 = vpack.c.b16 %v1021, %v1019
    %v1516 = vpack.c.b16 %v1024, %v1022
    %v1517 = vpack.c.b16 %v1025, %v1023
    %v1518 = vpack.c.b16 %v1028, %v1026
    %v1519 = vpack.c.b16 %v1029, %v1027
    %v1520 = vpack.c.b16 %v1032, %v1030
    %v1521 = vpack.c.b16 %v1033, %v1031
    %v1522 = vpack.c.b16 %v1036, %v1034
    %v1523 = vpack.c.b16 %v1037, %v1035
    %v1524 = vpack.c.b16 %v1040, %v1038
    %v1525 = vpack.c.b16 %v1041, %v1039
    %v1526 = vpack.c.b16 %v1044, %v1042
    %v1527 = vpack.c.b16 %v1045, %v1043
    %v1528 = vpack.c.b16 %v1048, %v1046
    %v1529 = vpack.c.b16 %v1049, %v1047
    %v1530 = vpack.c.b16 %v1052, %v1050
    %v1531 = vpack.c.b16 %v1053, %v1051
    %v1532 = vpack.c.b16 %v1056, %v1054
    %v1533 = vpack.c.b16 %v1057, %v1055
    %v1534 = vpack.c.b16 %v1060, %v1058
    %v1535 = vpack.c.b16 %v1061, %v1059
    %v1536 = vpack.c.b16 %v1064, %v1062
    %v1537 = vpack.c.b16 %v1065, %v1063
    %v1538 = vpack.c.b16 %v1068, %v1066
    %v1539 = vpack.c.b16 %v1069, %v1067
    %v1540 = vpack.c.b16 %v1072, %v1070
    %v1541 = vpack.c.b16 %v1073, %v1071
    %v1542 = vpack.c.b16 %v1076, %v1074
    %v1543 = vpack.c.b16 %v1077, %v1075
    %v1544 = vpack.c.b16 %v1080, %v1078
    %v1545 = vpack.c.b16 %v1081, %v1079
    %v1546 = vpack.c.b16 %v1084, %v1082
    %v1547 = vpack.c.b16 %v1085, %v1083
    %v1548 = vpack.c.b16 %v1088, %v1086
    %v1549 = vpack.c.b16 %v1089, %v1087
    %v1550 = vpack.c.b16 %v1092, %v1090
    %v1551 = vpack.c.b16 %v1093, %v1091
    %v1552 = vpack.c.b16 %v1096, %v1094
    %v1553 = vpack.c.b16 %v1097, %v1095
    %v1554 = vpack.c.b16 %v1100, %v1098
    %v1555 = vpack.c.b16 %v1101, %v1099
    %v1556 = vpack.c.b16 %v1104, %v1102
    %v1557 = vpack.c.b16 %v1105, %v1103
    %v1558 = vpack.c.b16 %v1108, %v1106
    %v1559 = vpack.c.b16 %v1109, %v1107
    %v1560 = vpack.c.b16 %v1112, %v1110
    %v1561 = vpack.c.b16 %v1113, %v1111
    %v1562 = vpack.c.b16 %v1116, %v1114
    %v1563 = vpack.c.b16 %v1117, %v1115
    %v1564 = vpack.c.b16 %v1120, %v1118
    %v1565 = vpack.c.b16 %v1121, %v1119
    %v1566 = vpack.c.b16 %v1124, %v1122
    %v1567 = vpack.c.b16 %v1125, %v1123
    %v1568 = vpack.c.b16 %v1128, %v1126
    %v1569 = vpack.c.b16 %v1129, %v1127
    %v1570 = vpack.c.b16 %v1132, %v1130
    %v1571 = vpack.c.b16 %v1133, %v1131
    %v1572 = vpack.c.b16 %v1136, %v1134
    %v1573 = vpack.c.b16 %v1137, %v1135
    %v1574 = vpack.c.b16 %v1140, %v1138
    %v1575 = vpack.c.b16 %v1141, %v1139
    %v1576 = vpack.c.b16 %v1144, %v1142
    %v1577 = vpack.c.b16 %v1145, %v1143
    %v1578 = vpack.c.b16 %v1148, %v1146
    %v1579 = vpack.c.b16 %v1149, %v1147
    %v1580 = vpack.c.b16 %v1152, %v1150
    %v1581 = vpack.c.b16 %v1153, %v1151
    %v1582 = vpack.c.b16 %v1156, %v1154
    %v1583 = vpack.c.b16 %v1157, %v1155
    %v1584 = vpack.c.b16 %v1160, %v1158
    %v1585 = vpack.c.b16 %v1161, %v1159
    %v1586 = vpack.c.b16 %v1164, %v1162
    %v1587 = vpack.c.b16 %v1165, %v1163
    %v1588 = vpack.c.b16 %v1168, %v1166
    %v1589 = vpack.c.b16 %v1169, %v1167
    %v1590 = vpack.c.b16 %v1172, %v1170
    %v1591 = vpack.c.b16 %v1173, %v1171
    %v1592 = vpack.c.b16 %v1176, %v1174
    %v1593 = vpack.c.b16 %v1177, %v1175
    %v1594 = vpack.c.b16 %v1180, %v1178
    %v1595 = vpack.c.b16 %v1181, %v1179
    %v1596 = vpack.c.b16 %v1184, %v1182
    %v1597 = vpack.c.b16 %v1185, %v1183
    %v1598 = vpack.c.b16 %v1188, %v1186
    %v1599 = vpack.c.b16 %v1189, %v1187
    %v1600 = vpack.c.b16 %v1192, %v1190
    %v1601 = vpack.c.b16 %v1193, %v1191
    %v1602 = vpack.c.b16 %v1196, %v1194
    %v1603 = vpack.c.b16 %v1197, %v1195
    %v1604 = vpack.c.b16 %v1200, %v1198
    %v1605 = vpack.c.b16 %v1201, %v1199
    %v1606 = vpack.c.b16 %v1204, %v1202
    %v1607 = vpack.c.b16 %v1205, %v1203
    %v1608 = vpack.c.b16 %v1208, %v1206
    %v1609 = vpack.c.b16 %v1209, %v1207
    %v1610 = vpack.c.b16 %v1212, %v1210
    %v1611 = vpack.c.b16 %v1213, %v1211
    %v1612 = vpack.c.b16 %v1216, %v1214
    %v1613 = vpack.c.b16 %v1217, %v1215
    %v1614 = vpack.c.b16 %v1220, %v1218
    %v1615 = vpack.c.b16 %v1221, %v1219
    %v1616 = vpack.c.b16 %v1224, %v1222
    %v1617 = vpack.c.b16 %v1225, %v1223
    %v1618 = vpack.c.b16 %v1228, %v1226
    %v1619 = vpack.c.b16 %v1229, %v1227
    %v1620 = vpack.c.b16 %v1232, %v1230
    %v1621 = vpack.c.b16 %v1233, %v1231
    %v1622 = vpack.c.b16 %v1236, %v1234
    %v1623 = vpack.c.b16 %v1237, %v1235
    %v1624 = vpack.c.b16 %v1240, %v1238
    %v1625 = vpack.c.b16 %v1241, %v1239
    %v1626 = vpack.c.b16 %v1244, %v1242
    %v1627 = vpack.c.b16 %v1245, %v1243
    %v1628 = vpack.c.b16 %v1248, %v1246
    %v1629 = vpack.c.b16 %v1249, %v1247
    %v1630 = vpack.c.b16 %v1252, %v1250
    %v1631 = vpack.c.b16 %v1253, %v1251
    %v1632 = vpack.c.b16 %v1256, %v1254
    %v1633 = vpack.c.b16 %v1257, %v1255
    %v1634 = vpack.c.b16 %v1260, %v1258
    %v1635 = vpack.c.b16 %v1261, %v1259
    %v1636 = vpack.c.b16 %v1264, %v1262
    %v1637 = vpack.c.b16 %v1265, %v1263
    %v1638 = vpack.c.b16 %v1268, %v1266
    %v1639 = vpack.c.b16 %v1269, %v1267
    %v1640 = vpack.c.b16 %v1272, %v1270
    %v1641 = vpack.c.b16 %v1273, %v1271
    %v1642 = vpack.c.b16 %v1276, %v1274
    %v1643 = vpack.c.b16 %v1277, %v1275
    %v1644 = vpack.c.b16 %v1280, %v1278
    %v1645 = vpack.c.b16 %v1281, %v1279
    %v1646 = vpack.c.b16 %v1284, %v1282
    %v1647 = vpack.c.b16 %v1285, %v1283
    %v1648 = vpack.c.b16 %v1288, %v1286
    %v1649 = vpack.c.b16 %v1289, %v1287
    %v1650 = vpack.c.b16 %v1292, %v1290
    %v1651 = vpack.c.b16 %v1293, %v1291
    %v1652 = vpack.c.b16 %v1296, %v1294
    %v1653 = vpack.c.b16 %v1297, %v1295
    %v1654 = vpack.c.b16 %v1300, %v1298
    %v1655 = vpack.c.b16 %v1301, %v1299
    %v1656 = vpack.c.b16 %v1304, %v1302
    %v1657 = vpack.c.b16 %v1305, %v1303
    %v1658 = vpack.c.b16 %v1308, %v1306
    %v1659 = vpack.c.b16 %v1309, %v1307
    %v1660 = vpack.c.b16 %v1312, %v1310
    %v1661 = vpack.c.b16 %v1313, %v1311
    %v1662 = vpack.c.b16 %v1316, %v1314
    %v1663 = vpack.c.b16 %v1317, %v1315
    %v1664 = vpack.c.b16 %v1320, %v1318
    %v1665 = vpack.c.b16 %v1321, %v1319
    %v1666 = vpack.c.b16 %v1324, %v1322
    %v1667 = vpack.c.b16 %v1325, %v1323
    %v1668 = vpack.c.b16 %v1328, %v1326
    %v1669 = vpack.c.b16 %v1329, %v1327
    %v1670 = vpack.c.b16 %v1332, %v1330
    %v1671 = vpack.c.b16 %v1333, %v1331
    %v1672 = vpack.c.b16 %v1336, %v1334
    %v1673 = vpack.c.b16 %v1337, %v1335
    %v1674 = vpack.c.b16 %v1340, %v1338
    %v1675 = vpack.c.b16 %v1341, %v1339
    %v1676 = vpack.c.b16 %v1344, %v1342
    %v1677 = vpack.c.b16 %v1345, %v1343
    %v1678 = vpack.c.b16 %v1348, %v1346
    %v1679 = vpack.c.b16 %v1349, %v1347
    %v1680 = vpack.c.b16 %v1352, %v1350
    %v1681 = vpack.c.b16 %v1353, %v1351
    %v1682 = vpack.c.b16 %v1356, %v1354
    %v1683 = vpack.c.b16 %v1357, %v1355
    %v1684 = vpack.c.b16 %v1360, %v1358
    %v1685 = vpack.c.b16 %v1361, %v1359
    %v1686 = vpack.c.b16 %v1364, %v1362
    %v1687 = vpack.c.b16 %v1365, %v1363
    %v1688 = vpack.c.b16 %v1368, %v1366
    %v1689 = vpack.c.b16 %v1369, %v1367
    %v1690 = vpack.c.b16 %v1372, %v1370
    %v1691 = vpack.c.b16 %v1373, %v1371
    %v1692 = vpack.c.b16 %v1376, %v1374
    %v1693 = vpack.c.b16 %v1377, %v1375
    %v1694 = vpack.c.b16 %v1380, %v1378
    %v1695 = vpack.c.b16 %v1381, %v1379
    %v1696 = vpack.c.b16 %v1384, %v1382
    %v1697 = vpack.c.b16 %v1385, %v1383
    %v1698 = vpack.c.b16 %v1388, %v1386
    %v1699 = vpack.c.b16 %v1389, %v1387
    %v1700 = vpack.c.b16 %v1392, %v1390
    %v1701 = vpack.c.b16 %v1393, %v1391
    %v1702 = vpack.c.b16 %v1396, %v1394
    %v1703 = vpack.c.b16 %v1397, %v1395
    %v1704 = vpack.c.b16 %v1400, %v1398
    %v1705 = vpack.c.b16 %v1401, %v1399
    %v1706 = vpack.c.b16 %v1404, %v1402
    %v1707 = vpack.c.b16 %v1405, %v1403
    %v1708 = vpack.c.b16 %v1408, %v1406
    %v1709 = vpack.c.b16 %v1409, %v1407
    %v1710 = vpack.c.b16 %v1412, %v1410
    %v1711 = vpack.c.b16 %v1413, %v1411
    %v1712 = vpack.c.b16 %v1416, %v1414
    %v1713 = vpack.c.b16 %v1417, %v1415
    %v1714 = vpack.c.b16 %v1420, %v1418
    %v1715 = vpack.c.b16 %v1421, %v1419
    %vm2010 = vcmask 392192
    %v2012 = vsel %vm2010, %v239, 0
    %2014 = vmatpush.bf16.msra.mxu0 %v1436
    %2015 = vmatpush.bf16.msra.mxu0 %v1434
    %2016 = vmatpush.bf16.msra.mxu0 %v1432
    %2017 = vmatpush.bf16.msra.mxu0 %v1430
    %2018 = vmatpush.bf16.msra.mxu0 %v1428
    %2019 = vmatpush.bf16.msra.mxu0 %v1426
    %2020 = vmatpush.bf16.msra.mxu0 %v1424
    %2021 = vmatpush.bf16.msra.mxu0 %v1422
    %2022 = vmatmul.bf16.gmra.mxu0 %v221
    %v2023 = vpop.f32.mrf.mxu0
    %v2024 = vadd.f32 %v536, %v2023
    %v2025 = vpop.f32.mrf.mxu0
    %2026 = vdwg.mxu0
    %2027 = vmatpush.bf16.msra.mxu0 %v1452
    %2028 = vmatpush.bf16.msra.mxu0 %v1450
    %2029 = vmatpush.bf16.msra.mxu0 %v1448
    %2030 = vmatpush.bf16.msra.mxu0 %v1446
    %2031 = vmatpush.bf16.msra.mxu0 %v1444
    %2032 = vmatpush.bf16.msra.mxu0 %v1442
    %2033 = vmatpush.bf16.msra.mxu0 %v1440
    %2034 = vmatpush.bf16.msra.mxu0 %v1438
    %2035 = vmatmul.bf16.gmra.mxu0 %v222
    %v2036 = vpop.f32.mrf.mxu0
    %v2037 = vadd.f32 %v2024, %v2036
    %v2038 = vpop.f32.mrf.mxu0
    %2039 = vdwg.mxu0
    %2040 = vmatpush.bf16.msra.mxu0 %v1468
    %2041 = vmatpush.bf16.msra.mxu0 %v1466
    %2042 = vmatpush.bf16.msra.mxu0 %v1464
    %2043 = vmatpush.bf16.msra.mxu0 %v1462
    %2044 = vmatpush.bf16.msra.mxu0 %v1460
    %2045 = vmatpush.bf16.msra.mxu0 %v1458
    %2046 = vmatpush.bf16.msra.mxu0 %v1456
    %2047 = vmatpush.bf16.msra.mxu0 %v1454
    %2048 = vmatmul.bf16.gmra.mxu0 %v223
    %v2049 = vpop.f32.mrf.mxu0
    %v2050 = vadd.f32 %v2037, %v2049
    %v2051 = vpop.f32.mrf.mxu0
    %2052 = vdwg.mxu0
    %2053 = vmatpush.bf16.msra.mxu0 %v1484
    %2054 = vmatpush.bf16.msra.mxu0 %v1482
    %2055 = vmatpush.bf16.msra.mxu0 %v1480
    %2056 = vmatpush.bf16.msra.mxu0 %v1478
    %2057 = vmatpush.bf16.msra.mxu0 %v1476
    %2058 = vmatpush.bf16.msra.mxu0 %v1474
    %2059 = vmatpush.bf16.msra.mxu0 %v1472
    %2060 = vmatpush.bf16.msra.mxu0 %v1470
    %2061 = vmatmul.bf16.gmra.mxu0 %v224
    %v2062 = vpop.f32.mrf.mxu0
    %v2063 = vadd.f32 %v2050, %v2062
    %v2064 = vpop.f32.mrf.mxu0
    %2065 = vdwg.mxu0
    %2066 = vmatpush.bf16.msra.mxu0 %v1500
    %2067 = vmatpush.bf16.msra.mxu0 %v1498
    %2068 = vmatpush.bf16.msra.mxu0 %v1496
    %2069 = vmatpush.bf16.msra.mxu0 %v1494
    %2070 = vmatpush.bf16.msra.mxu0 %v1492
    %2071 = vmatpush.bf16.msra.mxu0 %v1490
    %2072 = vmatpush.bf16.msra.mxu0 %v1488
    %2073 = vmatpush.bf16.msra.mxu0 %v1486
    %2074 = vmatmul.bf16.gmra.mxu0 %v225
    %v2075 = vpop.f32.mrf.mxu0
    %v2076 = vadd.f32 %v2063, %v2075
    %v2077 = vpop.f32.mrf.mxu0
    %2078 = vdwg.mxu0
    %2079 = vmatpush.bf16.msra.mxu0 %v1516
    %2080 = vmatpush.bf16.msra.mxu0 %v1514
    %2081 = vmatpush.bf16.msra.mxu0 %v1512
    %2082 = vmatpush.bf16.msra.mxu0 %v1510
    %2083 = vmatpush.bf16.msra.mxu0 %v1508
    %2084 = vmatpush.bf16.msra.mxu0 %v1506
    %2085 = vmatpush.bf16.msra.mxu0 %v1504
    %2086 = vmatpush.bf16.msra.mxu0 %v1502
    %2087 = vmatmul.bf16.gmra.mxu0 %v226
    %v2088 = vpop.f32.mrf.mxu0
    %v2089 = vadd.f32 %v2076, %v2088
    %v2090 = vpop.f32.mrf.mxu0
    %2091 = vdwg.mxu0
    %2092 = vmatpush.bf16.msra.mxu0 %v1532
    %2093 = vmatpush.bf16.msra.mxu0 %v1530
    %2094 = vmatpush.bf16.msra.mxu0 %v1528
    %2095 = vmatpush.bf16.msra.mxu0 %v1526
    %2096 = vmatpush.bf16.msra.mxu0 %v1524
    %2097 = vmatpush.bf16.msra.mxu0 %v1522
    %2098 = vmatpush.bf16.msra.mxu0 %v1520
    %2099 = vmatpush.bf16.msra.mxu0 %v1518
    %2100 = vmatmul.bf16.gmra.mxu0 %v227
    %v2101 = vpop.f32.mrf.mxu0
    %v2102 = vadd.f32 %v2089, %v2101
    %v2103 = vpop.f32.mrf.mxu0
    %2104 = vdwg.mxu0
    %2105 = vmatpush.bf16.msra.mxu0 %v1548
    %2106 = vmatpush.bf16.msra.mxu0 %v1546
    %2107 = vmatpush.bf16.msra.mxu0 %v1544
    %2108 = vmatpush.bf16.msra.mxu0 %v1542
    %2109 = vmatpush.bf16.msra.mxu0 %v1540
    %2110 = vmatpush.bf16.msra.mxu0 %v1538
    %2111 = vmatpush.bf16.msra.mxu0 %v1536
    %2112 = vmatpush.bf16.msra.mxu0 %v1534
    %2113 = vmatmul.bf16.gmra.mxu0 %v228
    %v2114 = vpop.f32.mrf.mxu0
    %v2115 = vadd.f32 %v2102, %v2114
    %v2116 = vpop.f32.mrf.mxu0
    %2117 = vdwg.mxu0
    %2118 = vmatpush.bf16.msra.mxu0 %v1564
    %2119 = vmatpush.bf16.msra.mxu0 %v1562
    %2120 = vmatpush.bf16.msra.mxu0 %v1560
    %2121 = vmatpush.bf16.msra.mxu0 %v1558
    %2122 = vmatpush.bf16.msra.mxu0 %v1556
    %2123 = vmatpush.bf16.msra.mxu0 %v1554
    %2124 = vmatpush.bf16.msra.mxu0 %v1552
    %2125 = vmatpush.bf16.msra.mxu0 %v1550
    %2126 = vmatmul.bf16.gmra.mxu0 %v229
    %v2127 = vpop.f32.mrf.mxu0
    %v2128 = vadd.f32 %v2115, %v2127
    %v2129 = vpop.f32.mrf.mxu0
    %2130 = vdwg.mxu0
    %2131 = vmatpush.bf16.msra.mxu0 %v1580
    %2132 = vmatpush.bf16.msra.mxu0 %v1578
    %2133 = vmatpush.bf16.msra.mxu0 %v1576
    %2134 = vmatpush.bf16.msra.mxu0 %v1574
    %2135 = vmatpush.bf16.msra.mxu0 %v1572
    %2136 = vmatpush.bf16.msra.mxu0 %v1570
    %2137 = vmatpush.bf16.msra.mxu0 %v1568
    %2138 = vmatpush.bf16.msra.mxu0 %v1566
    %2139 = vmatmul.bf16.gmra.mxu0 %v230
    %v2140 = vpop.f32.mrf.mxu0
    %v2141 = vadd.f32 %v2128, %v2140
    %v2142 = vpop.f32.mrf.mxu0
    %2143 = vdwg.mxu0
    %2144 = vmatpush.bf16.msra.mxu0 %v1596
    %2145 = vmatpush.bf16.msra.mxu0 %v1594
    %2146 = vmatpush.bf16.msra.mxu0 %v1592
    %2147 = vmatpush.bf16.msra.mxu0 %v1590
    %2148 = vmatpush.bf16.msra.mxu0 %v1588
    %2149 = vmatpush.bf16.msra.mxu0 %v1586
    %2150 = vmatpush.bf16.msra.mxu0 %v1584
    %2151 = vmatpush.bf16.msra.mxu0 %v1582
    %2152 = vmatmul.bf16.gmra.mxu0 %v231
    %v2153 = vpop.f32.mrf.mxu0
    %v2154 = vadd.f32 %v2141, %v2153
    %v2155 = vpop.f32.mrf.mxu0
    %2156 = vdwg.mxu0
    %2157 = vmatpush.bf16.msra.mxu0 %v1612
    %2158 = vmatpush.bf16.msra.mxu0 %v1610
    %2159 = vmatpush.bf16.msra.mxu0 %v1608
    %2160 = vmatpush.bf16.msra.mxu0 %v1606
    %2161 = vmatpush.bf16.msra.mxu0 %v1604
    %2162 = vmatpush.bf16.msra.mxu0 %v1602
    %2163 = vmatpush.bf16.msra.mxu0 %v1600
    %2164 = vmatpush.bf16.msra.mxu0 %v1598
    %2165 = vmatmul.bf16.gmra.mxu0 %v232
    %v2166 = vpop.f32.mrf.mxu0
    %v2167 = vadd.f32 %v2154, %v2166
    %v2168 = vpop.f32.mrf.mxu0
    %2169 = vdwg.mxu0
    %2170 = vmatpush.bf16.msra.mxu0 %v1628
    %2171 = vmatpush.bf16.msra.mxu0 %v1626
    %2172 = vmatpush.bf16.msra.mxu0 %v1624
    %2173 = vmatpush.bf16.msra.mxu0 %v1622
    %2174 = vmatpush.bf16.msra.mxu0 %v1620
    %2175 = vmatpush.bf16.msra.mxu0 %v1618
    %2176 = vmatpush.bf16.msra.mxu0 %v1616
    %2177 = vmatpush.bf16.msra.mxu0 %v1614
    %2178 = vmatmul.bf16.gmra.mxu0 %v233
    %v2179 = vpop.f32.mrf.mxu0
    %v2180 = vadd.f32 %v2167, %v2179
    %v2181 = vpop.f32.mrf.mxu0
    %2182 = vdwg.mxu0
    %2183 = vmatpush.bf16.msra.mxu0 %v1644
    %2184 = vmatpush.bf16.msra.mxu0 %v1642
    %2185 = vmatpush.bf16.msra.mxu0 %v1640
    %2186 = vmatpush.bf16.msra.mxu0 %v1638
    %2187 = vmatpush.bf16.msra.mxu0 %v1636
    %2188 = vmatpush.bf16.msra.mxu0 %v1634
    %2189 = vmatpush.bf16.msra.mxu0 %v1632
    %2190 = vmatpush.bf16.msra.mxu0 %v1630
    %2191 = vmatmul.bf16.gmra.mxu0 %v234
    %v2192 = vpop.f32.mrf.mxu0
    %v2193 = vadd.f32 %v2180, %v2192
    %v2194 = vpop.f32.mrf.mxu0
    %2195 = vdwg.mxu0
    %2196 = vmatpush.bf16.msra.mxu0 %v1660
    %2197 = vmatpush.bf16.msra.mxu0 %v1658
    %2198 = vmatpush.bf16.msra.mxu0 %v1656
    %2199 = vmatpush.bf16.msra.mxu0 %v1654
    %2200 = vmatpush.bf16.msra.mxu0 %v1652
    %2201 = vmatpush.bf16.msra.mxu0 %v1650
    %2202 = vmatpush.bf16.msra.mxu0 %v1648
    %2203 = vmatpush.bf16.msra.mxu0 %v1646
    %2204 = vmatmul.bf16.gmra.mxu0 %v235
    %v2205 = vpop.f32.mrf.mxu0
    %v2206 = vadd.f32 %v2193, %v2205
    %v2207 = vpop.f32.mrf.mxu0
    %2208 = vdwg.mxu0
    %2209 = vmatpush.bf16.msra.mxu0 %v1676
    %2210 = vmatpush.bf16.msra.mxu0 %v1674
    %2211 = vmatpush.bf16.msra.mxu0 %v1672
    %2212 = vmatpush.bf16.msra.mxu0 %v1670
    %2213 = vmatpush.bf16.msra.mxu0 %v1668
    %2214 = vmatpush.bf16.msra.mxu0 %v1666
    %2215 = vmatpush.bf16.msra.mxu0 %v1664
    %2216 = vmatpush.bf16.msra.mxu0 %v1662
    %2217 = vmatmul.bf16.gmra.mxu0 %v236
    %v2218 = vpop.f32.mrf.mxu0
    %v2219 = vadd.f32 %v2206, %v2218
    %v2220 = vpop.f32.mrf.mxu0
    %2221 = vdwg.mxu0
    %2222 = vmatpush.bf16.msra.mxu0 %v1692
    %2223 = vmatpush.bf16.msra.mxu0 %v1690
    %2224 = vmatpush.bf16.msra.mxu0 %v1688
    %2225 = vmatpush.bf16.msra.mxu0 %v1686
    %2226 = vmatpush.bf16.msra.mxu0 %v1684
    %2227 = vmatpush.bf16.msra.mxu0 %v1682
    %2228 = vmatpush.bf16.msra.mxu0 %v1680
    %2229 = vmatpush.bf16.msra.mxu0 %v1678
    %2230 = vmatmul.bf16.gmra.mxu0 %v237
    %v2231 = vpop.f32.mrf.mxu0
    %v2232 = vadd.f32 %v2219, %v2231
    %v2233 = vpop.f32.mrf.mxu0
    %2234 = vdwg.mxu0
    %2235 = vmatpush.bf16.msra.mxu0 %v1708
    %2236 = vmatpush.bf16.msra.mxu0 %v1706
    %2237 = vmatpush.bf16.msra.mxu0 %v1704
    %2238 = vmatpush.bf16.msra.mxu0 %v1702
    %2239 = vmatpush.bf16.msra.mxu0 %v1700
    %2240 = vmatpush.bf16.msra.mxu0 %v1698
    %2241 = vmatpush.bf16.msra.mxu0 %v1696
    %2242 = vmatpush.bf16.msra.mxu0 %v1694
    %2243 = vmatmul.bf16.gmra.mxu0 %v238
    %v2244 = vpop.f32.mrf.mxu0
    %v2245 = vadd.f32 %v2232, %v2244
    %v2246 = vpop.f32.mrf.mxu0
    %2247 = vdwg.mxu0
    %2248 = vmatpush.bf16.msra.mxu0 0
    %2249 = vmatpush.bf16.msra.mxu0 0
    %2250 = vmatpush.bf16.msra.mxu0 0
    %2251 = vmatpush.bf16.msra.mxu0 0
    %2252 = vmatpush.bf16.msra.mxu0 0
    %2253 = vmatpush.bf16.msra.mxu0 %v1714
    %2254 = vmatpush.bf16.msra.mxu0 %v1712
    %2255 = vmatpush.bf16.msra.mxu0 %v1710
    %2256 = vmatmul.bf16.gmra.mxu0 %v2012
    %v2257 = vpop.f32.mrf.mxu0
    %v2258 = vadd.f32 %v2245, %v2257
    %v2259 = vpop.f32.mrf.mxu0
    %2260 = vdwg.mxu0
    %2261 = vmatpush.bf16.msra.mxu0 %v1437
    %2262 = vmatpush.bf16.msra.mxu0 %v1435
    %2263 = vmatpush.bf16.msra.mxu0 %v1433
    %2264 = vmatpush.bf16.msra.mxu0 %v1431
    %2265 = vmatpush.bf16.msra.mxu0 %v1429
    %2266 = vmatpush.bf16.msra.mxu0 %v1427
    %2267 = vmatpush.bf16.msra.mxu0 %v1425
    %2268 = vmatpush.bf16.msra.mxu0 %v1423
    %2269 = vmatmul.bf16.gmra.mxu0 %v221
    %v2270 = vpop.f32.mrf.mxu0
    %v2271 = vadd.f32 %v537, %v2270
    %v2272 = vpop.f32.mrf.mxu0
    %2273 = vdwg.mxu0
    %2274 = vmatpush.bf16.msra.mxu0 %v1453
    %2275 = vmatpush.bf16.msra.mxu0 %v1451
    %2276 = vmatpush.bf16.msra.mxu0 %v1449
    %2277 = vmatpush.bf16.msra.mxu0 %v1447
    %2278 = vmatpush.bf16.msra.mxu0 %v1445
    %2279 = vmatpush.bf16.msra.mxu0 %v1443
    %2280 = vmatpush.bf16.msra.mxu0 %v1441
    %2281 = vmatpush.bf16.msra.mxu0 %v1439
    %2282 = vmatmul.bf16.gmra.mxu0 %v222
    %v2283 = vpop.f32.mrf.mxu0
    %v2284 = vadd.f32 %v2271, %v2283
    %v2285 = vpop.f32.mrf.mxu0
    %2286 = vdwg.mxu0
    %2287 = vmatpush.bf16.msra.mxu0 %v1469
    %2288 = vmatpush.bf16.msra.mxu0 %v1467
    %2289 = vmatpush.bf16.msra.mxu0 %v1465
    %2290 = vmatpush.bf16.msra.mxu0 %v1463
    %2291 = vmatpush.bf16.msra.mxu0 %v1461
    %2292 = vmatpush.bf16.msra.mxu0 %v1459
    %2293 = vmatpush.bf16.msra.mxu0 %v1457
    %2294 = vmatpush.bf16.msra.mxu0 %v1455
    %2295 = vmatmul.bf16.gmra.mxu0 %v223
    %v2296 = vpop.f32.mrf.mxu0
    %v2297 = vadd.f32 %v2284, %v2296
    %v2298 = vpop.f32.mrf.mxu0
    %2299 = vdwg.mxu0
    %2300 = vmatpush.bf16.msra.mxu0 %v1485
    %2301 = vmatpush.bf16.msra.mxu0 %v1483
    %2302 = vmatpush.bf16.msra.mxu0 %v1481
    %2303 = vmatpush.bf16.msra.mxu0 %v1479
    %2304 = vmatpush.bf16.msra.mxu0 %v1477
    %2305 = vmatpush.bf16.msra.mxu0 %v1475
    %2306 = vmatpush.bf16.msra.mxu0 %v1473
    %2307 = vmatpush.bf16.msra.mxu0 %v1471
    %2308 = vmatmul.bf16.gmra.mxu0 %v224
    %v2309 = vpop.f32.mrf.mxu0
    %v2310 = vadd.f32 %v2297, %v2309
    %v2311 = vpop.f32.mrf.mxu0
    %2312 = vdwg.mxu0
    %2313 = vmatpush.bf16.msra.mxu0 %v1501
    %2314 = vmatpush.bf16.msra.mxu0 %v1499
    %2315 = vmatpush.bf16.msra.mxu0 %v1497
    %2316 = vmatpush.bf16.msra.mxu0 %v1495
    %2317 = vmatpush.bf16.msra.mxu0 %v1493
    %2318 = vmatpush.bf16.msra.mxu0 %v1491
    %2319 = vmatpush.bf16.msra.mxu0 %v1489
    %2320 = vmatpush.bf16.msra.mxu0 %v1487
    %2321 = vmatmul.bf16.gmra.mxu0 %v225
    %v2322 = vpop.f32.mrf.mxu0
    %v2323 = vadd.f32 %v2310, %v2322
    %v2324 = vpop.f32.mrf.mxu0
    %2325 = vdwg.mxu0
    %2326 = vmatpush.bf16.msra.mxu0 %v1517
    %2327 = vmatpush.bf16.msra.mxu0 %v1515
    %2328 = vmatpush.bf16.msra.mxu0 %v1513
    %2329 = vmatpush.bf16.msra.mxu0 %v1511
    %2330 = vmatpush.bf16.msra.mxu0 %v1509
    %2331 = vmatpush.bf16.msra.mxu0 %v1507
    %2332 = vmatpush.bf16.msra.mxu0 %v1505
    %2333 = vmatpush.bf16.msra.mxu0 %v1503
    %2334 = vmatmul.bf16.gmra.mxu0 %v226
    %v2335 = vpop.f32.mrf.mxu0
    %v2336 = vadd.f32 %v2323, %v2335
    %v2337 = vpop.f32.mrf.mxu0
    %2338 = vdwg.mxu0
    %2339 = vmatpush.bf16.msra.mxu0 %v1533
    %2340 = vmatpush.bf16.msra.mxu0 %v1531
    %2341 = vmatpush.bf16.msra.mxu0 %v1529
    %2342 = vmatpush.bf16.msra.mxu0 %v1527
    %2343 = vmatpush.bf16.msra.mxu0 %v1525
    %2344 = vmatpush.bf16.msra.mxu0 %v1523
    %2345 = vmatpush.bf16.msra.mxu0 %v1521
    %2346 = vmatpush.bf16.msra.mxu0 %v1519
    %2347 = vmatmul.bf16.gmra.mxu0 %v227
    %v2348 = vpop.f32.mrf.mxu0
    %v2349 = vadd.f32 %v2336, %v2348
    %v2350 = vpop.f32.mrf.mxu0
    %2351 = vdwg.mxu0
    %2352 = vmatpush.bf16.msra.mxu0 %v1549
    %2353 = vmatpush.bf16.msra.mxu0 %v1547
    %2354 = vmatpush.bf16.msra.mxu0 %v1545
    %2355 = vmatpush.bf16.msra.mxu0 %v1543
    %2356 = vmatpush.bf16.msra.mxu0 %v1541
    %2357 = vmatpush.bf16.msra.mxu0 %v1539
    %2358 = vmatpush.bf16.msra.mxu0 %v1537
    %2359 = vmatpush.bf16.msra.mxu0 %v1535
    %2360 = vmatmul.bf16.gmra.mxu0 %v228
    %v2361 = vpop.f32.mrf.mxu0
    %v2362 = vadd.f32 %v2349, %v2361
    %v2363 = vpop.f32.mrf.mxu0
    %2364 = vdwg.mxu0
    %2365 = vmatpush.bf16.msra.mxu0 %v1565
    %2366 = vmatpush.bf16.msra.mxu0 %v1563
    %2367 = vmatpush.bf16.msra.mxu0 %v1561
    %2368 = vmatpush.bf16.msra.mxu0 %v1559
    %2369 = vmatpush.bf16.msra.mxu0 %v1557
    %2370 = vmatpush.bf16.msra.mxu0 %v1555
    %2371 = vmatpush.bf16.msra.mxu0 %v1553
    %2372 = vmatpush.bf16.msra.mxu0 %v1551
    %2373 = vmatmul.bf16.gmra.mxu0 %v229
    %v2374 = vpop.f32.mrf.mxu0
    %v2375 = vadd.f32 %v2362, %v2374
    %v2376 = vpop.f32.mrf.mxu0
    %2377 = vdwg.mxu0
    %2378 = vmatpush.bf16.msra.mxu0 %v1581
    %2379 = vmatpush.bf16.msra.mxu0 %v1579
    %2380 = vmatpush.bf16.msra.mxu0 %v1577
    %2381 = vmatpush.bf16.msra.mxu0 %v1575
    %2382 = vmatpush.bf16.msra.mxu0 %v1573
    %2383 = vmatpush.bf16.msra.mxu0 %v1571
    %2384 = vmatpush.bf16.msra.mxu0 %v1569
    %2385 = vmatpush.bf16.msra.mxu0 %v1567
    %2386 = vmatmul.bf16.gmra.mxu0 %v230
    %v2387 = vpop.f32.mrf.mxu0
    %v2388 = vadd.f32 %v2375, %v2387
    %v2389 = vpop.f32.mrf.mxu0
    %2390 = vdwg.mxu0
    %2391 = vmatpush.bf16.msra.mxu0 %v1597
    %2392 = vmatpush.bf16.msra.mxu0 %v1595
    %2393 = vmatpush.bf16.msra.mxu0 %v1593
    %2394 = vmatpush.bf16.msra.mxu0 %v1591
    %2395 = vmatpush.bf16.msra.mxu0 %v1589
    %2396 = vmatpush.bf16.msra.mxu0 %v1587
    %2397 = vmatpush.bf16.msra.mxu0 %v1585
    %2398 = vmatpush.bf16.msra.mxu0 %v1583
    %2399 = vmatmul.bf16.gmra.mxu0 %v231
    %v2400 = vpop.f32.mrf.mxu0
    %v2401 = vadd.f32 %v2388, %v2400
    %v2402 = vpop.f32.mrf.mxu0
    %2403 = vdwg.mxu0
    %2404 = vmatpush.bf16.msra.mxu0 %v1613
    %2405 = vmatpush.bf16.msra.mxu0 %v1611
    %2406 = vmatpush.bf16.msra.mxu0 %v1609
    %2407 = vmatpush.bf16.msra.mxu0 %v1607
    %2408 = vmatpush.bf16.msra.mxu0 %v1605
    %2409 = vmatpush.bf16.msra.mxu0 %v1603
    %2410 = vmatpush.bf16.msra.mxu0 %v1601
    %2411 = vmatpush.bf16.msra.mxu0 %v1599
    %2412 = vmatmul.bf16.gmra.mxu0 %v232
    %v2413 = vpop.f32.mrf.mxu0
    %v2414 = vadd.f32 %v2401, %v2413
    %v2415 = vpop.f32.mrf.mxu0
    %2416 = vdwg.mxu0
    %2417 = vmatpush.bf16.msra.mxu0 %v1629
    %2418 = vmatpush.bf16.msra.mxu0 %v1627
    %2419 = vmatpush.bf16.msra.mxu0 %v1625
    %2420 = vmatpush.bf16.msra.mxu0 %v1623
    %2421 = vmatpush.bf16.msra.mxu0 %v1621
    %2422 = vmatpush.bf16.msra.mxu0 %v1619
    %2423 = vmatpush.bf16.msra.mxu0 %v1617
    %2424 = vmatpush.bf16.msra.mxu0 %v1615
    %2425 = vmatmul.bf16.gmra.mxu0 %v233
    %v2426 = vpop.f32.mrf.mxu0
    %v2427 = vadd.f32 %v2414, %v2426
    %v2428 = vpop.f32.mrf.mxu0
    %2429 = vdwg.mxu0
    %2430 = vmatpush.bf16.msra.mxu0 %v1645
    %2431 = vmatpush.bf16.msra.mxu0 %v1643
    %2432 = vmatpush.bf16.msra.mxu0 %v1641
    %2433 = vmatpush.bf16.msra.mxu0 %v1639
    %2434 = vmatpush.bf16.msra.mxu0 %v1637
    %2435 = vmatpush.bf16.msra.mxu0 %v1635
    %2436 = vmatpush.bf16.msra.mxu0 %v1633
    %2437 = vmatpush.bf16.msra.mxu0 %v1631
    %2438 = vmatmul.bf16.gmra.mxu0 %v234
    %v2439 = vpop.f32.mrf.mxu0
    %v2440 = vadd.f32 %v2427, %v2439
    %v2441 = vpop.f32.mrf.mxu0
    %2442 = vdwg.mxu0
    %2443 = vmatpush.bf16.msra.mxu0 %v1661
    %2444 = vmatpush.bf16.msra.mxu0 %v1659
    %2445 = vmatpush.bf16.msra.mxu0 %v1657
    %2446 = vmatpush.bf16.msra.mxu0 %v1655
    %2447 = vmatpush.bf16.msra.mxu0 %v1653
    %2448 = vmatpush.bf16.msra.mxu0 %v1651
    %2449 = vmatpush.bf16.msra.mxu0 %v1649
    %2450 = vmatpush.bf16.msra.mxu0 %v1647
    %2451 = vmatmul.bf16.gmra.mxu0 %v235
    %v2452 = vpop.f32.mrf.mxu0
    %v2453 = vadd.f32 %v2440, %v2452
    %v2454 = vpop.f32.mrf.mxu0
    %2455 = vdwg.mxu0
    %2456 = vmatpush.bf16.msra.mxu0 %v1677
    %2457 = vmatpush.bf16.msra.mxu0 %v1675
    %2458 = vmatpush.bf16.msra.mxu0 %v1673
    %2459 = vmatpush.bf16.msra.mxu0 %v1671
    %2460 = vmatpush.bf16.msra.mxu0 %v1669
    %2461 = vmatpush.bf16.msra.mxu0 %v1667
    %2462 = vmatpush.bf16.msra.mxu0 %v1665
    %2463 = vmatpush.bf16.msra.mxu0 %v1663
    %2464 = vmatmul.bf16.gmra.mxu0 %v236
    %v2465 = vpop.f32.mrf.mxu0
    %v2466 = vadd.f32 %v2453, %v2465
    %v2467 = vpop.f32.mrf.mxu0
    %2468 = vdwg.mxu0
    %2469 = vmatpush.bf16.msra.mxu0 %v1693
    %2470 = vmatpush.bf16.msra.mxu0 %v1691
    %2471 = vmatpush.bf16.msra.mxu0 %v1689
    %2472 = vmatpush.bf16.msra.mxu0 %v1687
    %2473 = vmatpush.bf16.msra.mxu0 %v1685
    %2474 = vmatpush.bf16.msra.mxu0 %v1683
    %2475 = vmatpush.bf16.msra.mxu0 %v1681
    %2476 = vmatpush.bf16.msra.mxu0 %v1679
    %2477 = vmatmul.bf16.gmra.mxu0 %v237
    %v2478 = vpop.f32.mrf.mxu0
    %v2479 = vadd.f32 %v2466, %v2478
    %v2480 = vpop.f32.mrf.mxu0
    %2481 = vdwg.mxu0
    %2482 = vmatpush.bf16.msra.mxu0 %v1709
    %2483 = vmatpush.bf16.msra.mxu0 %v1707
    %2484 = vmatpush.bf16.msra.mxu0 %v1705
    %2485 = vmatpush.bf16.msra.mxu0 %v1703
    %2486 = vmatpush.bf16.msra.mxu0 %v1701
    %2487 = vmatpush.bf16.msra.mxu0 %v1699
    %2488 = vmatpush.bf16.msra.mxu0 %v1697
    %2489 = vmatpush.bf16.msra.mxu0 %v1695
    %2490 = vmatmul.bf16.gmra.mxu0 %v238
    %v2491 = vpop.f32.mrf.mxu0
    %v2492 = vadd.f32 %v2479, %v2491
    %v2493 = vpop.f32.mrf.mxu0
    %2494 = vdwg.mxu0
    %2495 = vmatpush.bf16.msra.mxu0 0
    %2496 = vmatpush.bf16.msra.mxu0 0
    %2497 = vmatpush.bf16.msra.mxu0 0
    %2498 = vmatpush.bf16.msra.mxu0 0
    %2499 = vmatpush.bf16.msra.mxu0 0
    %2500 = vmatpush.bf16.msra.mxu0 %v1715
    %2501 = vmatpush.bf16.msra.mxu0 %v1713
    %2502 = vmatpush.bf16.msra.mxu0 %v1711
    %2503 = vmatmul.bf16.gmra.mxu0 %v2012
    %v2504 = vpop.f32.mrf.mxu0
    %v2505 = vadd.f32 %v2492, %v2504
    %v2506 = vpop.f32.mrf.mxu0
    %2507 = vdwg.mxu0
    %v2508 = vmax.f32 %v2258, 0.0
    %v2509 = vmax.f32 %v2505, 0.0
    %v2510 = vpack.c.bf16 %v2508, %v2508
    %v2511 = vpack.c.bf16 %v2509, %v2509
    %v2512 = vld [vmem:[#allocation8] sm:$0xf]
    %v2513 = vld [vmem:[#allocation8 + $0x4] sm:$0xf]
    %v2514 = vld [vmem:[#allocation8 + $0x8] sm:$0xf]
    %v2515 = vld [vmem:[#allocation8 + $0xc] sm:$0xf]
    %v2516 = vld [vmem:[#allocation8 + $0x10] sm:$0xf]
    %v2517 = vld [vmem:[#allocation8 + $0x14] sm:$0xf]
    %v2518 = vld [vmem:[#allocation8 + $0x18] sm:$0xf]
    %v2519 = vld [vmem:[#allocation8 + $0x1c] sm:$0xf]
    %v2520 = vld [vmem:[#allocation8 + $0x20] sm:$0xf]
    %v2521 = vld [vmem:[#allocation8 + $0x24] sm:$0xf]
    %v2522 = vld [vmem:[#allocation8 + $0x28] sm:$0xf]
    %v2523 = vld [vmem:[#allocation8 + $0x2c] sm:$0xf]
    %v2524 = vld [vmem:[#allocation8 + $0x30] sm:$0xf]
    %v2525 = vld [vmem:[#allocation8 + $0x34] sm:$0xf]
    %v2526 = vld [vmem:[#allocation8 + $0x38] sm:$0xf]
    %v2527 = vld [vmem:[#allocation8 + $0x3c] sm:$0xf]
    %v2528 = vld [vmem:[#allocation8 + $0x40] sm:$0xf]
    %v2529 = vld [vmem:[#allocation8 + $0x44] sm:$0xf]
    %v2530 = vld [vmem:[#allocation8 + $0x48] sm:$0xf]
    %v2531 = vld [vmem:[#allocation8 + $0x4c] sm:$0xf]
    %v2532 = vld [vmem:[#allocation8 + $0x50] sm:$0xf]
    %v2533 = vld [vmem:[#allocation8 + $0x54] sm:$0xf]
    %v2534 = vld [vmem:[#allocation8 + $0x58] sm:$0xf]
    %v2535 = vld [vmem:[#allocation8 + $0x5c] sm:$0xf]
    %v2536 = vld [vmem:[#allocation8 + $0x60] sm:$0xf]
    %v2537 = vld [vmem:[#allocation8 + $0x64] sm:$0xf]
    %v2538 = vld [vmem:[#allocation8 + $0x68] sm:$0xf]
    %v2539 = vld [vmem:[#allocation8 + $0x6c] sm:$0xf]
    %v2540 = vld [vmem:[#allocation8 + $0x70] sm:$0xf]
    %v2541 = vld [vmem:[#allocation8 + $0x74] sm:$0xf]
    %v2542 = vld [vmem:[#allocation8 + $0x78] sm:$0xf]
    %v2543 = vld [vmem:[#allocation8 + $0x7c] sm:$0xf]
    %v2544 = vld [vmem:[#allocation10] sm:$0x1]
    %v2546 = vperm.slane %v2544, 0
    %v2580 = vunpack.c.l.b16 %v2512
    %v2581 = vunpack.c.l.b16 %v2513
    %v2582 = vunpack.c.l.b16 %v2514
    %v2583 = vunpack.c.l.b16 %v2515
    %v2584 = vunpack.c.l.b16 %v2516
    %v2585 = vunpack.c.l.b16 %v2517
    %v2586 = vunpack.c.l.b16 %v2518
    %v2587 = vunpack.c.l.b16 %v2519
    %v2588 = vunpack.c.l.b16 %v2520
    %v2589 = vunpack.c.l.b16 %v2521
    %v2590 = vunpack.c.l.b16 %v2522
    %v2591 = vunpack.c.l.b16 %v2523
    %v2592 = vunpack.c.l.b16 %v2524
    %v2593 = vunpack.c.l.b16 %v2525
    %v2594 = vunpack.c.l.b16 %v2526
    %v2595 = vunpack.c.l.b16 %v2527
    %v2596 = vunpack.c.l.b16 %v2528
    %v2597 = vunpack.c.l.b16 %v2529
    %v2598 = vunpack.c.l.b16 %v2530
    %v2599 = vunpack.c.l.b16 %v2531
    %v2600 = vunpack.c.l.b16 %v2532
    %v2601 = vunpack.c.l.b16 %v2533
    %v2602 = vunpack.c.l.b16 %v2534
    %v2603 = vunpack.c.l.b16 %v2535
    %v2604 = vunpack.c.l.b16 %v2536
    %v2605 = vunpack.c.l.b16 %v2537
    %v2606 = vunpack.c.l.b16 %v2538
    %v2607 = vunpack.c.l.b16 %v2539
    %v2608 = vunpack.c.l.b16 %v2540
    %v2609 = vunpack.c.l.b16 %v2541
    %v2610 = vunpack.c.l.b16 %v2542
    %v2611 = vunpack.c.l.b16 %v2543
    %v2612 = vpack.c.b16 %v2581, %v2580
    %v2613 = vpack.c.b16 %v2583, %v2582
    %v2614 = vpack.c.b16 %v2585, %v2584
    %v2615 = vpack.c.b16 %v2587, %v2586
    %v2616 = vpack.c.b16 %v2589, %v2588
    %v2617 = vpack.c.b16 %v2591, %v2590
    %v2618 = vpack.c.b16 %v2593, %v2592
    %v2619 = vpack.c.b16 %v2595, %v2594
    %v2620 = vpack.c.b16 %v2597, %v2596
    %v2621 = vpack.c.b16 %v2599, %v2598
    %v2622 = vpack.c.b16 %v2601, %v2600
    %v2623 = vpack.c.b16 %v2603, %v2602
    %v2624 = vpack.c.b16 %v2605, %v2604
    %v2625 = vpack.c.b16 %v2607, %v2606
    %v2626 = vpack.c.b16 %v2609, %v2608
    %v2627 = vpack.c.b16 %v2611, %v2610
    %2644 = vmatpush.bf16.msra.mxu0 %v2619
    %2645 = vmatpush.bf16.msra.mxu0 %v2618
    %2646 = vmatpush.bf16.msra.mxu0 %v2617
    %2647 = vmatpush.bf16.msra.mxu0 %v2616
    %2648 = vmatpush.bf16.msra.mxu0 %v2615
    %2649 = vmatpush.bf16.msra.mxu0 %v2614
    %2650 = vmatpush.bf16.msra.mxu0 %v2613
    %2651 = vmatpush.bf16.msra.mxu0 %v2612
    %2652 = vmatmul.bf16.gmra.mxu0 %v2510
    %v2653 = vpop.f32.mrf.mxu0
    %v2654 = vadd.f32 %v2546, %v2653
    %v2655 = vpop.f32.mrf.mxu0
    %2656 = vdwg.mxu0
    %2657 = vmatpush.bf16.msra.mxu0 %v2627
    %2658 = vmatpush.bf16.msra.mxu0 %v2626
    %2659 = vmatpush.bf16.msra.mxu0 %v2625
    %2660 = vmatpush.bf16.msra.mxu0 %v2624
    %2661 = vmatpush.bf16.msra.mxu0 %v2623
    %2662 = vmatpush.bf16.msra.mxu0 %v2622
    %2663 = vmatpush.bf16.msra.mxu0 %v2621
    %2664 = vmatpush.bf16.msra.mxu0 %v2620
    %2665 = vmatmul.bf16.gmra.mxu0 %v2511
    %v2666 = vpop.f32.mrf.mxu0
    %v2667 = vadd.f32 %v2654, %v2666
    %v2668 = vpop.f32.mrf.mxu0
    %2669 = vdwg.mxu0
    %v2670 = vmax.f32 %v2667, 0.0
    %v2671 = vpack.c.bf16 %v2670, %v2670
    %v2672 = vld [vmem:[%s5] sm:$0xf]
    %v2673 = vld [vmem:[%s5 + $0x4] sm:$0xf]
    %v2674 = vld [vmem:[%s5 + $0x8] sm:$0xf]
    %v2675 = vld [vmem:[%s5 + $0xc] sm:$0xf]
    %v2676 = vld [vmem:[%s5 + $0x10] sm:$0xf]
    %v2677 = vld [vmem:[%s5 + $0x14] sm:$0xf]
    %v2678 = vld [vmem:[%s5 + $0x18] sm:$0xf]
    %v2679 = vld [vmem:[%s5 + $0x1c] sm:$0xf]
    %v2680 = vld [vmem:[%s5 + $0x20] sm:$0xf]
    %v2681 = vld [vmem:[%s5 + $0x24] sm:$0xf]
    %v2682 = vld [vmem:[%s5 + $0x28] sm:$0xf]
    %v2683 = vld [vmem:[%s5 + $0x2c] sm:$0xf]
    %v2684 = vld [vmem:[%s5 + $0x30] sm:$0xf]
    %v2685 = vld [vmem:[%s5 + $0x34] sm:$0xf]
    %v2686 = vld [vmem:[%s5 + $0x38] sm:$0xf]
    %v2687 = vld [vmem:[%s5 + $0x3c] sm:$0xf]
    %v2688 = vld [vmem:[#allocation11] sm:$0x1]
    %v2690 = vperm.slane %v2688, 0
    %v2708 = vunpack.c.l.b16 %v2672
    %v2709 = vunpack.c.l.b16 %v2673
    %v2710 = vunpack.c.l.b16 %v2674
    %v2711 = vunpack.c.l.b16 %v2675
    %v2712 = vunpack.c.l.b16 %v2676
    %v2713 = vunpack.c.l.b16 %v2677
    %v2714 = vunpack.c.l.b16 %v2678
    %v2715 = vunpack.c.l.b16 %v2679
    %v2716 = vunpack.c.l.b16 %v2680
    %v2717 = vunpack.c.l.b16 %v2681
    %v2718 = vunpack.c.l.b16 %v2682
    %v2719 = vunpack.c.l.b16 %v2683
    %v2720 = vunpack.c.l.b16 %v2684
    %v2721 = vunpack.c.l.b16 %v2685
    %v2722 = vunpack.c.l.b16 %v2686
    %v2723 = vunpack.c.l.b16 %v2687
    %v2724 = vpack.c.b16 %v2709, %v2708
    %v2725 = vpack.c.b16 %v2711, %v2710
    %v2726 = vpack.c.b16 %v2713, %v2712
    %v2727 = vpack.c.b16 %v2715, %v2714
    %v2728 = vpack.c.b16 %v2717, %v2716
    %v2729 = vpack.c.b16 %v2719, %v2718
    %v2730 = vpack.c.b16 %v2721, %v2720
    %v2731 = vpack.c.b16 %v2723, %v2722
    %2740 = vmatpush.bf16.msra.mxu0 %v2731
    %2741 = vmatpush.bf16.msra.mxu0 %v2730
    %2742 = vmatpush.bf16.msra.mxu0 %v2729
    %2743 = vmatpush.bf16.msra.mxu0 %v2728
    %2744 = vmatpush.bf16.msra.mxu0 %v2727
    %2745 = vmatpush.bf16.msra.mxu0 %v2726
    %2746 = vmatpush.bf16.msra.mxu0 %v2725
    %2747 = vmatpush.bf16.msra.mxu0 %v2724
    %2748 = vmatmul.bf16.gmra.mxu0 %v2671
    %v2749 = vpop.f32.mrf.mxu0
    %v2750 = vadd.f32 %v2690, %v2749
    %v2751 = vpop.f32.mrf.mxu0
    %2752 = vdwg.mxu0
    %v2753 = vmax.f32 %v2750, 0.0
    %vm2754 = vcmask 80896
    %2755 = vst.msk [vmem:[#allocation13] sm:$0xff] %vm2754, %v2753
    // Predicated region
    $region54: #{_fastnet_pallas.1} parent=1 // pred_check
      _
    $region55: #{_fastnet_pallas.1} parent=1 // pred_check_branch
      %2757 = sbr.rel (0) target = $region57
    $region56: #{_fastnet_pallas.1} parent=1 // pred_region
      %2759 = vsyncadd [#allocation4], 96
      %s2760 = sshll.u32 [#allocation13], 4
      %s2761 = int_to_ptr.vmem [resolvable:$true] %s2760
      %s2762 = sshll.u32 %s7, 4
      %s2763 = int_to_ptr.hbm [resolvable:$true] %s2762
      %2768 = dma.vmem_to_hbm [thread:$0]  %s2761, 32, %s2763, [#allocation4], 32, 32, 2
    $region57: #{_fastnet_pallas.1} parent=1 // pred_fallthru
      _
    // Predicated region
    $region58: #{_fastnet_pallas.1} parent=1 // pred_check
      _
    $region59: #{_fastnet_pallas.1} parent=1 // pred_check_branch
      %2770 = sbr.rel (0) target = $region61
    $region60: #{_fastnet_pallas.1} parent=1 // pred_region
      %2772 = dma.done [#allocation4], 128
    $region61: #{_fastnet_pallas.1} parent=1 // pred_fallthru
      _
    %2773 = vsyncpa [#allocation3], 1
    %2774 = vsyncpa [#allocation6], 1
    %2775 = vsyncpa [#allocation9], 1
    %2776 = vsyncpa [#allocation12], 1
    %2777 = vsyncpa [#allocation4], 1

</llo_original>
